<compile_context>
chip_gen: v5e
topology: v5e:2x2
jax: 0.10.0
libtpu: 0.0.40
codegen_flags: <defaults>
</compile_context>

<pallas_src>
import jax
import jax.numpy as jnp
from jax.experimental import pallas as pl
from jax.experimental.pallas import tpu as pltpu

# --- small, TPU-friendly scaled-down config (real model: H=768, 12 layers) ---
B = 2          # batch (number of "sentences")
S = 8          # sequence length (tokens)
H = 128        # hidden size  (stands in for 768)
F = 512        # FFN inner size (4 * H, like BERT)
NH = 2         # attention heads
HD = H // NH   # head dim
VOCAB = 64


def _layernorm(x, gamma, beta, eps=1e-12):
    # one-pass: var = E[x^2] - mu^2  (halves the cross-lane reductions)
    mu = jnp.mean(x, axis=-1, keepdims=True)
    msq = jnp.mean(x * x, axis=-1, keepdims=True)
    var = jnp.maximum(msq - mu * mu, 0.0)
    return (x - mu) * jax.lax.rsqrt(var + eps) * gamma + beta


def sbert_encode_kernel(
    x_ref,        # (B, S, H)  f32 token embeddings
    amask_ref,    # (B, 1, S)  f32 attention mask (1.0 = real token)
    pmask_ref,    # (B, S, 1)  f32 pooling mask   (1.0 = real token)
    wqkv_ref,     # (H, 3H) bf16  fused Q|K|V weight (1/sqrt(HD) folded into Q)
    bqkv_ref,     # (1, 3H) f32   fused Q|K|V bias
    wo_ref,       # (H, H)  bf16  un-split output projection
    bo_ref,       # (1, H)  f32
    ln1g_ref, ln1b_ref,  # (1, H) f32
    w1_ref, b1_ref,      # (H, F) bf16 / (1, F) f32
    w2_ref, b2_ref,      # (F, H) bf16 / (1, H) f32
    ln2g_ref, ln2b_ref,  # (1, H) f32
    o_ref,        # (B, H) f32 pooled sentence embeddings
):
    x = x_ref[...].reshape(B * S, H)          # fold batch: (BS, H) f32
    x16 = x.astype(jnp.bfloat16)              # MXU input precision

    # ---- fused QKV projection: one lane-dense (BS, 3H) matmul ----
    qkv = (jnp.dot(x16, wqkv_ref[...], preferred_element_type=jnp.float32)
           + bqkv_ref[...])                   # (BS, 3H) f32
    qkv16 = qkv.astype(jnp.bfloat16)

    def heads_to_batch(col_off):
        # static lane slices per head, heads folded into the batch dim:
        # result (NH*B, S, HD), batch index = h*B + b
        return jnp.concatenate(
            [qkv16[:, col_off + h * HD: col_off + (h + 1) * HD].reshape(B, S, HD)
             for h in range(NH)],
            axis=0)

    q_b = heads_to_batch(0)        # (NH*B, S, HD) bf16 (already 1/sqrt(HD)-scaled)
    k_b = heads_to_batch(H)
    v_b = heads_to_batch(2 * H)

    # additive attention bias built in-kernel (VPU) from the (B,1,S) mask
    bias = (amask_ref[...] - 1.0) * 1e9               # (B, 1, S) f32
    bias_bh = jnp.concatenate([bias] * NH, axis=0)    # (NH*B, 1, S)

    # ---- attention: one batched contraction per stage over (NH*B) ----
    s = jnp.einsum("bqd,bkd->bqk", q_b, k_b,
                   preferred_element_type=jnp.float32)        # (NH*B, S, S) f32
    s = s + bias_bh
    s_max = jnp.max(s, axis=-1, keepdims=True)
    e = jnp.exp(s - s_max)                                    # f32 softmax numerics
    p = e * pl.reciprocal(jnp.sum(e, axis=-1, keepdims=True), approx=True)

    ctx = jnp.einsum("bqk,bkd->bqd", p.astype(jnp.bfloat16), v_b,
                     preferred_element_type=jnp.float32)      # (NH*B, S, HD)

    # ---- fused output projection: lane-concat heads -> one (BS,H)@(H,H) ----
    ctx_cat = jnp.concatenate(
        [ctx[h * B:(h + 1) * B].reshape(B * S, HD).astype(jnp.bfloat16)
         for h in range(NH)],
        axis=-1)                                              # (BS, H) bf16
    attn = (jnp.dot(ctx_cat, wo_ref[...], preferred_element_type=jnp.float32)
            + bo_ref[...])
    h1 = _layernorm(x + attn, ln1g_ref[...], ln1b_ref[...])   # (BS, H) f32

    # ---- feed-forward ----
    ff = (jnp.dot(h1.astype(jnp.bfloat16), w1_ref[...],
                  preferred_element_type=jnp.float32) + b1_ref[...])
    # TODO(synk): HF BERT uses exact erf-GELU; tanh approximation is used here
    # (EUP-friendly, tiny numeric drift vs the PyTorch reference). On v6e/v7x
    # this could run in bf16; kept f32 so the same kernel is safe on v5e.
    ff = jax.nn.gelu(ff, approximate=True)
    ff = (jnp.dot(ff.astype(jnp.bfloat16), w2_ref[...],
                  preferred_element_type=jnp.float32) + b2_ref[...])
    h2 = _layernorm(h1 + ff, ln2g_ref[...], ln2b_ref[...])    # (BS, H) f32

    # ---- masked mean pooling (SentenceTransformer default) ----
    pmask = pmask_ref[...]                                    # (B, S, 1)
    summed = jnp.sum(h2.reshape(B, S, H) * pmask, axis=1)     # (B, H)
    denom = jnp.maximum(jnp.sum(pmask, axis=1), 1e-9)         # (B, 1)
    o_ref[...] = summed / denom     # exact divide: user-facing embeddings


WEIGHT_ORDER = ("wqkv", "bqkv", "wo", "bo",
                "ln1g", "ln1b", "w1", "b1", "w2", "b2", "ln2g", "ln2b")


def _resident_spec(shape):
    zeros = (0,) * len(shape)
    return pl.BlockSpec(shape, lambda i: zeros)   # constant block -> fetched once


def _prep_inputs(params, attn_mask):
    """Fold scale into Q, fuse QKV weights, cast MXU weights to bf16."""
    scale = 1.0 / jnp.sqrt(jnp.float32(HD))
    wqkv = jnp.concatenate(
        [params["wq"] * scale, params["wk"], params["wv"]], axis=1
    ).astype(jnp.bfloat16)                                    # (H, 3H)
    bqkv = jnp.concatenate(
        [params["bq"] * scale, params["bk"], params["bv"]], axis=1)   # (1, 3H)

    weights = dict(
        wqkv=wqkv, bqkv=bqkv,
        wo=params["wo"].astype(jnp.bfloat16), bo=params["bo"],
        ln1g=params["ln1g"], ln1b=params["ln1b"],
        w1=params["w1"].astype(jnp.bfloat16), b1=params["b1"],
        w2=params["w2"].astype(jnp.bfloat16), b2=params["b2"],
        ln2g=params["ln2g"], ln2b=params["ln2b"],
    )
    amask = attn_mask.reshape(B, 1, S).astype(jnp.float32)    # for attention bias
    pmask = attn_mask.reshape(B, S, 1).astype(jnp.float32)    # for mean pooling
    return weights, amask, pmask


def sbert_encode(token_emb, attn_mask, params):
    """token_emb: (B, S, H) f32, attn_mask: (B, S) f32 -> (B, H) f32."""
    weights, amask, pmask = _prep_inputs(params, attn_mask)
    w_list = [weights[n] for n in WEIGHT_ORDER]

    out = pl.pallas_call(
        sbert_encode_kernel,
        out_shape=jax.ShapeDtypeStruct((B, H), jnp.float32),
        # Toy size: one pipeline step, everything resident. At real scale this
        # becomes ("parallel" row-tile axis, "arbitrary" layer-stream axis) —
        # see header comments for the per-chip VMEM/buffering plan.
        grid=(1,),
        in_specs=[
            _resident_spec(token_emb.shape),
            _resident_spec(amask.shape),
            _resident_spec(pmask.shape),
            *[_resident_spec(w.shape) for w in w_list],
        ],
        out_specs=pl.BlockSpec((B, H), lambda i: (0, 0)),   # lane-dense output
        compiler_params=pltpu.CompilerParams(
            dimension_semantics=("arbitrary",),
            vmem_limit_bytes=32 * 1024 * 1024,
        ),
    )(token_emb, amask, pmask, *w_list)
    return out


def init_params(key):
    ks = jax.random.split(key, 8)
    scale = 0.02
    p = {
        "emb": scale * jax.random.normal(ks[0], (VOCAB, H), jnp.float32),
        "pos": scale * jax.random.normal(ks[1], (S, H), jnp.float32),
        "wq": scale * jax.random.normal(ks[2], (H, H), jnp.float32),
        "wk": scale * jax.random.normal(ks[3], (H, H), jnp.float32),
        "wv": scale * jax.random.normal(ks[4], (H, H), jnp.float32),
        "wo": scale * jax.random.normal(ks[5], (H, H), jnp.float32),
        "w1": scale * jax.random.normal(ks[6], (H, F), jnp.float32),
        "w2": scale * jax.random.normal(ks[7], (F, H), jnp.float32),
        "bq": jnp.zeros((1, H), jnp.float32),
        "bk": jnp.zeros((1, H), jnp.float32),
        "bv": jnp.zeros((1, H), jnp.float32),
        "bo": jnp.zeros((1, H), jnp.float32),
        "b1": jnp.zeros((1, F), jnp.float32),
        "b2": jnp.zeros((1, H), jnp.float32),
        "ln1g": jnp.ones((1, H), jnp.float32),
        "ln1b": jnp.zeros((1, H), jnp.float32),
        "ln2g": jnp.ones((1, H), jnp.float32),
        "ln2b": jnp.zeros((1, H), jnp.float32),
    }
    return p


if __name__ == "__main__":
    key = jax.random.PRNGKey(0)
    k_ids, k_params = jax.random.split(key)

    params = init_params(k_params)

    # Pre-tokenized input ids (stands in for the text input of forward()).
    token_ids = jax.random.randint(k_ids, (B, S), 0, VOCAB, dtype=jnp.int32)
    # Variable-length sentences -> attention mask.
    lengths = jnp.array([S, 5], dtype=jnp.int32)
    attn_mask = (jnp.arange(S)[None, :] < lengths[:, None]).astype(jnp.float32)

    # Glue: embedding lookup + positional embeddings (plain JAX).
    # NOTE: pad-token embeddings are NOT zeroed (matches real BERT); padding is
    # handled by the attention bias and the pooling mask.
    token_emb = params["emb"][token_ids] + params["pos"][None, :, :]

    embeddings = sbert_encode(token_emb, attn_mask, params)
    jax.block_until_ready(embeddings)

    assert embeddings.shape == (B, H) and embeddings.dtype == jnp.float32
    assert bool(jnp.all(jnp.isfinite(embeddings)))
    print("KERNEL_OK")
</pallas_src>

<mosaic_0001>
module attributes {stable_mosaic.version = 11 : i64} {
  func.func @sbert_encode_kernel(%arg0: i32, %arg1: memref<2x8x128xf32, #tpu.memory_space<vmem>>, %arg2: memref<2x1x8xf32, #tpu.memory_space<vmem>>, %arg3: memref<2x8x1xf32, #tpu.memory_space<vmem>>, %arg4: memref<128x384xbf16, #tpu.memory_space<vmem>>, %arg5: memref<1x384xf32, #tpu.memory_space<vmem>>, %arg6: memref<128x128xbf16, #tpu.memory_space<vmem>>, %arg7: memref<1x128xf32, #tpu.memory_space<vmem>>, %arg8: memref<1x128xf32, #tpu.memory_space<vmem>>, %arg9: memref<1x128xf32, #tpu.memory_space<vmem>>, %arg10: memref<128x512xbf16, #tpu.memory_space<vmem>>, %arg11: memref<1x512xf32, #tpu.memory_space<vmem>>, %arg12: memref<512x128xbf16, #tpu.memory_space<vmem>>, %arg13: memref<1x128xf32, #tpu.memory_space<vmem>>, %arg14: memref<1x128xf32, #tpu.memory_space<vmem>>, %arg15: memref<1x128xf32, #tpu.memory_space<vmem>>, %arg16: memref<2x128xf32, #tpu.memory_space<vmem>>) attributes {dimension_semantics = [#tpu.dimension_semantics<arbitrary>], iteration_bounds = array<i64: 1>, scalar_prefetch = 0 : i64, scratch_operands = 0 : i64, tpu.core_type = #tpu.core_type<tc>, window_params = [{pipeline_mode = #tpu.pipeline_mode<synchronous>, transform_indices = @transform_0, window_bounds = array<i64: 2, 8, 128>}, {pipeline_mode = #tpu.pipeline_mode<synchronous>, transform_indices = @transform_1, window_bounds = array<i64: 2, 1, 8>}, {pipeline_mode = #tpu.pipeline_mode<synchronous>, transform_indices = @transform_2, window_bounds = array<i64: 2, 8, 1>}, {pipeline_mode = #tpu.pipeline_mode<synchronous>, transform_indices = @transform_3, window_bounds = array<i64: 128, 384>}, {pipeline_mode = #tpu.pipeline_mode<synchronous>, transform_indices = @transform_4, window_bounds = array<i64: 1, 384>}, {pipeline_mode = #tpu.pipeline_mode<synchronous>, transform_indices = @transform_5, window_bounds = array<i64: 128, 128>}, {pipeline_mode = #tpu.pipeline_mode<synchronous>, transform_indices = @transform_6, window_bounds = array<i64: 1, 128>}, {pipeline_mode = #tpu.pipeline_mode<synchronous>, transform_indices = @transform_7, window_bounds = array<i64: 1, 128>}, {pipeline_mode = #tpu.pipeline_mode<synchronous>, transform_indices = @transform_8, window_bounds = array<i64: 1, 128>}, {pipeline_mode = #tpu.pipeline_mode<synchronous>, transform_indices = @transform_9, window_bounds = array<i64: 128, 512>}, {pipeline_mode = #tpu.pipeline_mode<synchronous>, transform_indices = @transform_10, window_bounds = array<i64: 1, 512>}, {pipeline_mode = #tpu.pipeline_mode<synchronous>, transform_indices = @transform_11, window_bounds = array<i64: 512, 128>}, {pipeline_mode = #tpu.pipeline_mode<synchronous>, transform_indices = @transform_12, window_bounds = array<i64: 1, 128>}, {pipeline_mode = #tpu.pipeline_mode<synchronous>, transform_indices = @transform_13, window_bounds = array<i64: 1, 128>}, {pipeline_mode = #tpu.pipeline_mode<synchronous>, transform_indices = @transform_14, window_bounds = array<i64: 1, 128>}, {pipeline_mode = #tpu.pipeline_mode<synchronous>, transform_indices = @transform_15, window_bounds = array<i64: 2, 128>}]} {
    %c0 = arith.constant 0 : index
    %c0_0 = arith.constant 0 : index
    %c0_1 = arith.constant 0 : index
    %0 = vector.load %arg1[%c0, %c0_0, %c0_1] : memref<2x8x128xf32, #tpu.memory_space<vmem>>, vector<2x8x128xf32>
    %1 = vector.shape_cast %0 : vector<2x8x128xf32> to vector<16x128xf32>
    %2 = arith.truncf %1 : vector<16x128xf32> to vector<16x128xbf16>
    %c0_2 = arith.constant 0 : index
    %c0_3 = arith.constant 0 : index
    %3 = vector.load %arg4[%c0_2, %c0_3] : memref<128x384xbf16, #tpu.memory_space<vmem>>, vector<128x384xbf16>
    %cst = arith.constant dense<0.000000e+00> : vector<16x384xf32>
    %4 = tpu.matmul %2, %3, %cst {dimension_numbers = #tpu.dot_dimension_numbers<[1], [0], [0], [1], [0, 0, 1, 1], [], []>} : vector<16x128xbf16>, vector<128x384xbf16>, vector<16x384xf32> -> vector<16x384xf32>
    %c0_4 = arith.constant 0 : index
    %c0_5 = arith.constant 0 : index
    %5 = vector.load %arg5[%c0_4, %c0_5] : memref<1x384xf32, #tpu.memory_space<vmem>>, vector<1x384xf32>
    %6 = vector.broadcast %5 : vector<1x384xf32> to vector<16x384xf32>
    %7 = arith.addf %4, %6 : vector<16x384xf32>
    %8 = arith.truncf %7 : vector<16x384xf32> to vector<16x384xbf16>
    %9 = vector.extract_strided_slice %8 {offsets = [0, 0], sizes = [16, 64], strides = [1, 1]} : vector<16x384xbf16> to vector<16x64xbf16>
    %10 = vector.shape_cast %9 : vector<16x64xbf16> to vector<2x8x64xbf16>
    %11 = vector.extract_strided_slice %8 {offsets = [0, 64], sizes = [16, 64], strides = [1, 1]} : vector<16x384xbf16> to vector<16x64xbf16>
    %12 = vector.shape_cast %11 : vector<16x64xbf16> to vector<2x8x64xbf16>
    %13 = tpu.concatenate %10, %12 in 0 : vector<2x8x64xbf16>, vector<2x8x64xbf16> -> vector<4x8x64xbf16>
    %14 = vector.extract_strided_slice %8 {offsets = [0, 128], sizes = [16, 64], strides = [1, 1]} : vector<16x384xbf16> to vector<16x64xbf16>
    %15 = vector.shape_cast %14 : vector<16x64xbf16> to vector<2x8x64xbf16>
    %16 = vector.extract_strided_slice %8 {offsets = [0, 192], sizes = [16, 64], strides = [1, 1]} : vector<16x384xbf16> to vector<16x64xbf16>
    %17 = vector.shape_cast %16 : vector<16x64xbf16> to vector<2x8x64xbf16>
    %18 = tpu.concatenate %15, %17 in 0 : vector<2x8x64xbf16>, vector<2x8x64xbf16> -> vector<4x8x64xbf16>
    %19 = vector.extract_strided_slice %8 {offsets = [0, 256], sizes = [16, 64], strides = [1, 1]} : vector<16x384xbf16> to vector<16x64xbf16>
    %20 = vector.shape_cast %19 : vector<16x64xbf16> to vector<2x8x64xbf16>
    %21 = vector.extract_strided_slice %8 {offsets = [0, 320], sizes = [16, 64], strides = [1, 1]} : vector<16x384xbf16> to vector<16x64xbf16>
    %22 = vector.shape_cast %21 : vector<16x64xbf16> to vector<2x8x64xbf16>
    %23 = tpu.concatenate %20, %22 in 0 : vector<2x8x64xbf16>, vector<2x8x64xbf16> -> vector<4x8x64xbf16>
    %c0_6 = arith.constant 0 : index
    %c0_7 = arith.constant 0 : index
    %c0_8 = arith.constant 0 : index
    %24 = vector.load %arg2[%c0_6, %c0_7, %c0_8] : memref<2x1x8xf32, #tpu.memory_space<vmem>>, vector<2x1x8xf32>
    %cst_9 = arith.constant 1.000000e+00 : f32
    %25 = vector.broadcast %cst_9 : f32 to vector<2x1x8xf32>
    %26 = arith.subf %24, %25 : vector<2x1x8xf32>
    %cst_10 = arith.constant 1.000000e+09 : f32
    %27 = vector.broadcast %cst_10 : f32 to vector<2x1x8xf32>
    %28 = arith.mulf %26, %27 : vector<2x1x8xf32>
    %29 = tpu.concatenate %28, %28 in 0 : vector<2x1x8xf32>, vector<2x1x8xf32> -> vector<4x1x8xf32>
    "tpu.trace_start"() <{level = 10 : i32, message = "bqd,bkd->bqk"}> : () -> ()
    %cst_11 = arith.constant dense<0.000000e+00> : vector<4x8x8xf32>
    %30 = tpu.matmul %13, %18, %cst_11 {dimension_numbers = #tpu.dot_dimension_numbers<[2], [2], [1], [1], [0, 0, 0, 1, 1, 1], [0], [0]>} : vector<4x8x64xbf16>, vector<4x8x64xbf16>, vector<4x8x8xf32> -> vector<4x8x8xf32>
    "tpu.trace_stop"() : () -> ()
    %31 = vector.broadcast %29 : vector<4x1x8xf32> to vector<4x8x8xf32>
    %32 = arith.addf %30, %31 : vector<4x8x8xf32>
    %cst_12 = arith.constant dense<0xFF800000> : vector<4x8xf32>
    %33 = vector.multi_reduction <maximumf>, %32, %cst_12 [2] : vector<4x8x8xf32> to vector<4x8xf32>
    %34 = vector.shape_cast %33 : vector<4x8xf32> to vector<4x8x1xf32>
    %35 = vector.broadcast %34 : vector<4x8x1xf32> to vector<4x8x8xf32>
    %36 = arith.subf %32, %35 : vector<4x8x8xf32>
    %37 = math.exp %36 : vector<4x8x8xf32>
    %cst_13 = arith.constant dense<0.000000e+00> : vector<4x8xf32>
    %38 = vector.multi_reduction <add>, %37, %cst_13 [2] : vector<4x8x8xf32> to vector<4x8xf32>
    %39 = vector.shape_cast %38 : vector<4x8xf32> to vector<4x8x1xf32>
    %40 = tpu.reciprocal %39 {approx = true} : vector<4x8x1xf32> -> vector<4x8x1xf32>
    %41 = vector.broadcast %40 : vector<4x8x1xf32> to vector<4x8x8xf32>
    %42 = arith.mulf %37, %41 : vector<4x8x8xf32>
    %43 = arith.truncf %42 : vector<4x8x8xf32> to vector<4x8x8xbf16>
    "tpu.trace_start"() <{level = 10 : i32, message = "bqk,bkd->bqd"}> : () -> ()
    %cst_14 = arith.constant dense<0.000000e+00> : vector<4x8x64xf32>
    %44 = tpu.matmul %43, %23, %cst_14 {dimension_numbers = #tpu.dot_dimension_numbers<[2], [1], [1], [2], [0, 0, 0, 1, 1, 2], [0], [0]>} : vector<4x8x8xbf16>, vector<4x8x64xbf16>, vector<4x8x64xf32> -> vector<4x8x64xf32>
    "tpu.trace_stop"() : () -> ()
    %45 = vector.extract_strided_slice %44 {offsets = [0, 0, 0], sizes = [2, 8, 64], strides = [1, 1, 1]} : vector<4x8x64xf32> to vector<2x8x64xf32>
    %46 = vector.shape_cast %45 : vector<2x8x64xf32> to vector<16x64xf32>
    %47 = arith.truncf %46 : vector<16x64xf32> to vector<16x64xbf16>
    %48 = vector.extract_strided_slice %44 {offsets = [2, 0, 0], sizes = [2, 8, 64], strides = [1, 1, 1]} : vector<4x8x64xf32> to vector<2x8x64xf32>
    %49 = vector.shape_cast %48 : vector<2x8x64xf32> to vector<16x64xf32>
    %50 = arith.truncf %49 : vector<16x64xf32> to vector<16x64xbf16>
    %51 = tpu.concatenate %47, %50 in 1 : vector<16x64xbf16>, vector<16x64xbf16> -> vector<16x128xbf16>
    %c0_15 = arith.constant 0 : index
    %c0_16 = arith.constant 0 : index
    %52 = vector.load %arg6[%c0_15, %c0_16] : memref<128x128xbf16, #tpu.memory_space<vmem>>, vector<128x128xbf16>
    %cst_17 = arith.constant dense<0.000000e+00> : vector<16x128xf32>
    %53 = tpu.matmul %51, %52, %cst_17 {dimension_numbers = #tpu.dot_dimension_numbers<[1], [0], [0], [1], [0, 0, 1, 1], [], []>} : vector<16x128xbf16>, vector<128x128xbf16>, vector<16x128xf32> -> vector<16x128xf32>
    %c0_18 = arith.constant 0 : index
    %c0_19 = arith.constant 0 : index
    %54 = vector.load %arg7[%c0_18, %c0_19] : memref<1x128xf32, #tpu.memory_space<vmem>>, vector<1x128xf32>
    %55 = vector.broadcast %54 : vector<1x128xf32> to vector<16x128xf32>
    %56 = arith.addf %53, %55 : vector<16x128xf32>
    %57 = arith.addf %1, %56 : vector<16x128xf32>
    %c0_20 = arith.constant 0 : index
    %c0_21 = arith.constant 0 : index
    %58 = vector.load %arg8[%c0_20, %c0_21] : memref<1x128xf32, #tpu.memory_space<vmem>>, vector<1x128xf32>
    %c0_22 = arith.constant 0 : index
    %c0_23 = arith.constant 0 : index
    %59 = vector.load %arg9[%c0_22, %c0_23] : memref<1x128xf32, #tpu.memory_space<vmem>>, vector<1x128xf32>
    %cst_24 = arith.constant dense<0.000000e+00> : vector<16xf32>
    %60 = vector.multi_reduction <add>, %57, %cst_24 [1] : vector<16x128xf32> to vector<16xf32>
    %61 = vector.shape_cast %60 : vector<16xf32> to vector<16x1xf32>
    %cst_25 = arith.constant 1.280000e+02 : f32
    %62 = vector.broadcast %cst_25 : f32 to vector<16x1xf32>
    %63 = arith.divf %61, %62 : vector<16x1xf32>
    %64 = arith.mulf %57, %57 : vector<16x128xf32>
    %cst_26 = arith.constant dense<0.000000e+00> : vector<16xf32>
    %65 = vector.multi_reduction <add>, %64, %cst_26 [1] : vector<16x128xf32> to vector<16xf32>
    %66 = vector.shape_cast %65 : vector<16xf32> to vector<16x1xf32>
    %cst_27 = arith.constant 1.280000e+02 : f32
    %67 = vector.broadcast %cst_27 : f32 to vector<16x1xf32>
    %68 = arith.divf %66, %67 : vector<16x1xf32>
    %69 = arith.mulf %63, %63 : vector<16x1xf32>
    %70 = arith.subf %68, %69 : vector<16x1xf32>
    %cst_28 = arith.constant 0.000000e+00 : f32
    %71 = vector.broadcast %cst_28 : f32 to vector<16x1xf32>
    %72 = arith.maximumf %70, %71 : vector<16x1xf32>
    %73 = vector.broadcast %63 : vector<16x1xf32> to vector<16x128xf32>
    %74 = arith.subf %57, %73 : vector<16x128xf32>
    %cst_29 = arith.constant 9.99999996E-13 : f32
    %75 = vector.broadcast %cst_29 : f32 to vector<16x1xf32>
    %76 = arith.addf %72, %75 : vector<16x1xf32>
    %77 = math.rsqrt %76 : vector<16x1xf32>
    %78 = vector.broadcast %77 : vector<16x1xf32> to vector<16x128xf32>
    %79 = arith.mulf %74, %78 : vector<16x128xf32>
    %80 = vector.broadcast %58 : vector<1x128xf32> to vector<16x128xf32>
    %81 = arith.mulf %79, %80 : vector<16x128xf32>
    %82 = vector.broadcast %59 : vector<1x128xf32> to vector<16x128xf32>
    %83 = arith.addf %81, %82 : vector<16x128xf32>
    %84 = arith.truncf %83 : vector<16x128xf32> to vector<16x128xbf16>
    %c0_30 = arith.constant 0 : index
    %c0_31 = arith.constant 0 : index
    %85 = vector.load %arg10[%c0_30, %c0_31] : memref<128x512xbf16, #tpu.memory_space<vmem>>, vector<128x512xbf16>
    %cst_32 = arith.constant dense<0.000000e+00> : vector<16x512xf32>
    %86 = tpu.matmul %84, %85, %cst_32 {dimension_numbers = #tpu.dot_dimension_numbers<[1], [0], [0], [1], [0, 0, 1, 1], [], []>} : vector<16x128xbf16>, vector<128x512xbf16>, vector<16x512xf32> -> vector<16x512xf32>
    %c0_33 = arith.constant 0 : index
    %c0_34 = arith.constant 0 : index
    %87 = vector.load %arg11[%c0_33, %c0_34] : memref<1x512xf32, #tpu.memory_space<vmem>>, vector<1x512xf32>
    %88 = vector.broadcast %87 : vector<1x512xf32> to vector<16x512xf32>
    %89 = arith.addf %86, %88 : vector<16x512xf32>
    %90 = arith.mulf %89, %89 : vector<16x512xf32>
    %91 = arith.mulf %89, %90 : vector<16x512xf32>
    %cst_35 = arith.constant 4.471500e-02 : f32
    %92 = vector.broadcast %cst_35 : f32 to vector<16x512xf32>
    %93 = arith.mulf %92, %91 : vector<16x512xf32>
    %94 = arith.addf %89, %93 : vector<16x512xf32>
    %cst_36 = arith.constant 0.797884583 : f32
    %95 = vector.broadcast %cst_36 : f32 to vector<16x512xf32>
    %96 = arith.mulf %95, %94 : vector<16x512xf32>
    %97 = math.tanh %96 : vector<16x512xf32>
    %cst_37 = arith.constant 1.000000e+00 : f32
    %98 = vector.broadcast %cst_37 : f32 to vector<16x512xf32>
    %99 = arith.addf %98, %97 : vector<16x512xf32>
    %cst_38 = arith.constant 5.000000e-01 : f32
    %100 = vector.broadcast %cst_38 : f32 to vector<16x512xf32>
    %101 = arith.mulf %100, %99 : vector<16x512xf32>
    %102 = arith.mulf %89, %101 : vector<16x512xf32>
    %103 = arith.truncf %102 : vector<16x512xf32> to vector<16x512xbf16>
    %c0_39 = arith.constant 0 : index
    %c0_40 = arith.constant 0 : index
    %104 = vector.load %arg12[%c0_39, %c0_40] : memref<512x128xbf16, #tpu.memory_space<vmem>>, vector<512x128xbf16>
    %cst_41 = arith.constant dense<0.000000e+00> : vector<16x128xf32>
    %105 = tpu.matmul %103, %104, %cst_41 {dimension_numbers = #tpu.dot_dimension_numbers<[1], [0], [0], [1], [0, 0, 1, 1], [], []>} : vector<16x512xbf16>, vector<512x128xbf16>, vector<16x128xf32> -> vector<16x128xf32>
    %c0_42 = arith.constant 0 : index
    %c0_43 = arith.constant 0 : index
    %106 = vector.load %arg13[%c0_42, %c0_43] : memref<1x128xf32, #tpu.memory_space<vmem>>, vector<1x128xf32>
    %107 = vector.broadcast %106 : vector<1x128xf32> to vector<16x128xf32>
    %108 = arith.addf %105, %107 : vector<16x128xf32>
    %109 = arith.addf %83, %108 : vector<16x128xf32>
    %c0_44 = arith.constant 0 : index
    %c0_45 = arith.constant 0 : index
    %110 = vector.load %arg14[%c0_44, %c0_45] : memref<1x128xf32, #tpu.memory_space<vmem>>, vector<1x128xf32>
    %c0_46 = arith.constant 0 : index
    %c0_47 = arith.constant 0 : index
    %111 = vector.load %arg15[%c0_46, %c0_47] : memref<1x128xf32, #tpu.memory_space<vmem>>, vector<1x128xf32>
    %cst_48 = arith.constant dense<0.000000e+00> : vector<16xf32>
    %112 = vector.multi_reduction <add>, %109, %cst_48 [1] : vector<16x128xf32> to vector<16xf32>
    %113 = vector.shape_cast %112 : vector<16xf32> to vector<16x1xf32>
    %cst_49 = arith.constant 1.280000e+02 : f32
    %114 = vector.broadcast %cst_49 : f32 to vector<16x1xf32>
    %115 = arith.divf %113, %114 : vector<16x1xf32>
    %116 = arith.mulf %109, %109 : vector<16x128xf32>
    %cst_50 = arith.constant dense<0.000000e+00> : vector<16xf32>
    %117 = vector.multi_reduction <add>, %116, %cst_50 [1] : vector<16x128xf32> to vector<16xf32>
    %118 = vector.shape_cast %117 : vector<16xf32> to vector<16x1xf32>
    %cst_51 = arith.constant 1.280000e+02 : f32
    %119 = vector.broadcast %cst_51 : f32 to vector<16x1xf32>
    %120 = arith.divf %118, %119 : vector<16x1xf32>
    %121 = arith.mulf %115, %115 : vector<16x1xf32>
    %122 = arith.subf %120, %121 : vector<16x1xf32>
    %cst_52 = arith.constant 0.000000e+00 : f32
    %123 = vector.broadcast %cst_52 : f32 to vector<16x1xf32>
    %124 = arith.maximumf %122, %123 : vector<16x1xf32>
    %125 = vector.broadcast %115 : vector<16x1xf32> to vector<16x128xf32>
    %126 = arith.subf %109, %125 : vector<16x128xf32>
    %cst_53 = arith.constant 9.99999996E-13 : f32
    %127 = vector.broadcast %cst_53 : f32 to vector<16x1xf32>
    %128 = arith.addf %124, %127 : vector<16x1xf32>
    %129 = math.rsqrt %128 : vector<16x1xf32>
    %130 = vector.broadcast %129 : vector<16x1xf32> to vector<16x128xf32>
    %131 = arith.mulf %126, %130 : vector<16x128xf32>
    %132 = vector.broadcast %110 : vector<1x128xf32> to vector<16x128xf32>
    %133 = arith.mulf %131, %132 : vector<16x128xf32>
    %134 = vector.broadcast %111 : vector<1x128xf32> to vector<16x128xf32>
    %135 = arith.addf %133, %134 : vector<16x128xf32>
    %c0_54 = arith.constant 0 : index
    %c0_55 = arith.constant 0 : index
    %c0_56 = arith.constant 0 : index
    %136 = vector.load %arg3[%c0_54, %c0_55, %c0_56] : memref<2x8x1xf32, #tpu.memory_space<vmem>>, vector<2x8x1xf32>
    %137 = vector.shape_cast %135 : vector<16x128xf32> to vector<2x8x128xf32>
    %138 = vector.broadcast %136 : vector<2x8x1xf32> to vector<2x8x128xf32>
    %139 = arith.mulf %137, %138 : vector<2x8x128xf32>
    %cst_57 = arith.constant dense<0.000000e+00> : vector<2x128xf32>
    %140 = vector.multi_reduction <add>, %139, %cst_57 [1] : vector<2x8x128xf32> to vector<2x128xf32>
    %cst_58 = arith.constant dense<0.000000e+00> : vector<2x1xf32>
    %141 = vector.multi_reduction <add>, %136, %cst_58 [1] : vector<2x8x1xf32> to vector<2x1xf32>
    %cst_59 = arith.constant 9.99999971E-10 : f32
    %142 = vector.broadcast %cst_59 : f32 to vector<2x1xf32>
    %143 = arith.maximumf %141, %142 : vector<2x1xf32>
    %144 = vector.broadcast %143 : vector<2x1xf32> to vector<2x128xf32>
    %145 = arith.divf %140, %144 : vector<2x128xf32>
    %c0_60 = arith.constant 0 : index
    %c0_61 = arith.constant 0 : index
    %146 = vector.load %arg16[%c0_60, %c0_61] : memref<2x128xf32, #tpu.memory_space<vmem>>, vector<2x128xf32>
    tpu.vector_store %arg16[%c0_60, %c0_61], %145 {strides = array<i32>} : memref<2x128xf32, #tpu.memory_space<vmem>>, vector<2x128xf32>,
    return
  }
  func.func @transform_0(%arg0: i32) -> (i32, i32, i32) {
    %c0_i32 = arith.constant 0 : i32
    %c0_i32_0 = arith.constant 0 : i32
    %c0_i32_1 = arith.constant 0 : i32
    %c0_i32_2 = arith.constant 0 : i32
    return %c0_i32, %c0_i32_0, %c0_i32_1 : i32, i32, i32
  }
  func.func @transform_1(%arg0: i32) -> (i32, i32, i32) {
    %c0_i32 = arith.constant 0 : i32
    %c0_i32_0 = arith.constant 0 : i32
    %c0_i32_1 = arith.constant 0 : i32
    %c0_i32_2 = arith.constant 0 : i32
    return %c0_i32, %c0_i32_0, %c0_i32_1 : i32, i32, i32
  }
  func.func @transform_2(%arg0: i32) -> (i32, i32, i32) {
    %c0_i32 = arith.constant 0 : i32
    %c0_i32_0 = arith.constant 0 : i32
    %c0_i32_1 = arith.constant 0 : i32
    %c0_i32_2 = arith.constant 0 : i32
    return %c0_i32, %c0_i32_0, %c0_i32_1 : i32, i32, i32
  }
  func.func @transform_3(%arg0: i32) -> (i32, i32) {
    %c0_i32 = arith.constant 0 : i32
    %c0_i32_0 = arith.constant 0 : i32
    %c0_i32_1 = arith.constant 0 : i32
    return %c0_i32, %c0_i32_0 : i32, i32
  }
  func.func @transform_4(%arg0: i32) -> (i32, i32) {
    %c0_i32 = arith.constant 0 : i32
    %c0_i32_0 = arith.constant 0 : i32
    %c0_i32_1 = arith.constant 0 : i32
    return %c0_i32, %c0_i32_0 : i32, i32
  }
  func.func @transform_5(%arg0: i32) -> (i32, i32) {
    %c0_i32 = arith.constant 0 : i32
    %c0_i32_0 = arith.constant 0 : i32
    %c0_i32_1 = arith.constant 0 : i32
    return %c0_i32, %c0_i32_0 : i32, i32
  }
  func.func @transform_6(%arg0: i32) -> (i32, i32) {
    %c0_i32 = arith.constant 0 : i32
    %c0_i32_0 = arith.constant 0 : i32
    %c0_i32_1 = arith.constant 0 : i32
    return %c0_i32, %c0_i32_0 : i32, i32
  }
  func.func @transform_7(%arg0: i32) -> (i32, i32) {
    %c0_i32 = arith.constant 0 : i32
    %c0_i32_0 = arith.constant 0 : i32
    %c0_i32_1 = arith.constant 0 : i32
    return %c0_i32, %c0_i32_0 : i32, i32
  }
  func.func @transform_8(%arg0: i32) -> (i32, i32) {
    %c0_i32 = arith.constant 0 : i32
    %c0_i32_0 = arith.constant 0 : i32
    %c0_i32_1 = arith.constant 0 : i32
    return %c0_i32, %c0_i32_0 : i32, i32
  }
  func.func @transform_9(%arg0: i32) -> (i32, i32) {
    %c0_i32 = arith.constant 0 : i32
    %c0_i32_0 = arith.constant 0 : i32
    %c0_i32_1 = arith.constant 0 : i32
    return %c0_i32, %c0_i32_0 : i32, i32
  }
  func.func @transform_10(%arg0: i32) -> (i32, i32) {
    %c0_i32 = arith.constant 0 : i32
    %c0_i32_0 = arith.constant 0 : i32
    %c0_i32_1 = arith.constant 0 : i32
    return %c0_i32, %c0_i32_0 : i32, i32
  }
  func.func @transform_11(%arg0: i32) -> (i32, i32) {
    %c0_i32 = arith.constant 0 : i32
    %c0_i32_0 = arith.constant 0 : i32
    %c0_i32_1 = arith.constant 0 : i32
    return %c0_i32, %c0_i32_0 : i32, i32
  }
  func.func @transform_12(%arg0: i32) -> (i32, i32) {
    %c0_i32 = arith.constant 0 : i32
    %c0_i32_0 = arith.constant 0 : i32
    %c0_i32_1 = arith.constant 0 : i32
    return %c0_i32, %c0_i32_0 : i32, i32
  }
  func.func @transform_13(%arg0: i32) -> (i32, i32) {
    %c0_i32 = arith.constant 0 : i32
    %c0_i32_0 = arith.constant 0 : i32
    %c0_i32_1 = arith.constant 0 : i32
    return %c0_i32, %c0_i32_0 : i32, i32
  }
  func.func @transform_14(%arg0: i32) -> (i32, i32) {
    %c0_i32 = arith.constant 0 : i32
    %c0_i32_0 = arith.constant 0 : i32
    %c0_i32_1 = arith.constant 0 : i32
    return %c0_i32, %c0_i32_0 : i32, i32
  }
  func.func @transform_15(%arg0: i32) -> (i32, i32) {
    %c0_i32 = arith.constant 0 : i32
    %c0_i32_0 = arith.constant 0 : i32
    %c0_i32_1 = arith.constant 0 : i32
    return %c0_i32, %c0_i32_0 : i32, i32
  }
}

</mosaic_0001>

<llo_original>
// kernel: tpu_custom_call.1
$region0: #{tpu_custom_call.1}
  #allocation0 [shape = 'u32[]', space=smem, size = 0x4, offset = 0x4, fixed_abs, tag = 'smem constant byte address 0x4 - core index']
  #allocation1 [shape = 'u32[72,128]{1,0:T(1,128)}', space=vmem, size = 0x9000, scoped, tag = 'internal scratch']
  %s0 = inlined_call_operand.vmem [shape: f32[2,8,128], index: 0, kind: input, shape index: {}]
  %s1 = inlined_call_operand.hbm [shape: f32[2,1,8], index: 1, kind: input, shape index: {}]
  %s2 = inlined_call_operand.vmem [shape: f32[2,8,1], index: 2, kind: input, shape index: {}]
  %s3 = inlined_call_operand.hbm [shape: bf16[128,384], index: 3, kind: input, shape index: {}]
  %s4 = inlined_call_operand.hbm [shape: f32[1,384], index: 4, kind: input, shape index: {}]
  %s5 = inlined_call_operand.hbm [shape: bf16[128,128], index: 5, kind: input, shape index: {}]
  %s6 = inlined_call_operand.vmem [shape: f32[1,128], index: 6, kind: input, shape index: {}]
  %s7 = inlined_call_operand.vmem [shape: f32[1,128], index: 7, kind: input, shape index: {}]
  %s8 = inlined_call_operand.vmem [shape: f32[1,128], index: 8, kind: input, shape index: {}]
  %s9 = inlined_call_operand.hbm [shape: bf16[128,512], index: 9, kind: input, shape index: {}]
  %s10 = inlined_call_operand.vmem [shape: f32[1,512], index: 10, kind: input, shape index: {}]
  %s11 = inlined_call_operand.hbm [shape: bf16[512,128], index: 11, kind: input, shape index: {}]
  %s12 = inlined_call_operand.vmem [shape: f32[1,128], index: 12, kind: input, shape index: {}]
  %s13 = inlined_call_operand.vmem [shape: f32[1,128], index: 13, kind: input, shape index: {}]
  %s14 = inlined_call_operand.vmem [shape: f32[1,128], index: 14, kind: input, shape index: {}]
  %s15 = inlined_call_operand.hbm [shape: f32[2,128], index: 15, kind: output, shape index: {}]
  %s16 = sld [smem:[#allocation0]]
  $region94: #{tpu_custom_call.1} parent=0
    _
  %s18 = ssub.s32 1, %s16
  %s19 = scalar_select 0, %s18, %s16
  $region1: #{tpu_custom_call.1} parent=0
    #allocation2 [shape = 'u8[1024]{0}', space=vmem, size = 0x400, scoped, tag = 'input window, operand 1, single buffered']
    #allocation3 [shape = 's32[1]{0}', space=sflag, size = 0x4, scoped, tag = 'scoped memory for tpu_custom_call.1']
    #allocation4 [shape = 's32[1]{0}', space=sflag, size = 0x4, scoped, tag = 'scoped memory for tpu_custom_call.1']
    #allocation5 [shape = 'u8[98304]{0}', space=vmem, size = 0x18000, scoped, tag = 'input window, operand 3, single buffered']
    #allocation6 [shape = 's32[1]{0}', space=sflag, size = 0x4, scoped, tag = 'scoped memory for tpu_custom_call.1']
    #allocation7 [shape = 'u8[1536]{0}', space=vmem, size = 0x800, scoped, tag = 'input window, operand 4, single buffered']
    #allocation8 [shape = 'u8[32768]{0}', space=vmem, size = 0x8000, scoped, tag = 'input window, operand 5, single buffered']
    #allocation9 [shape = 's32[1]{0}', space=sflag, size = 0x4, scoped, tag = 'scoped memory for tpu_custom_call.1']
    #allocation10 [shape = 'u8[131072]{0}', space=vmem, size = 0x20000, scoped, tag = 'input window, operand 9, single buffered']
    #allocation11 [shape = 'u8[131072]{0}', space=vmem, size = 0x20000, scoped, tag = 'input window, operand 11, single buffered']
    #allocation12 [shape = 's32[1]{0}', space=sflag, size = 0x4, scoped, tag = 'scoped memory for tpu_custom_call.1']
    #allocation13 [shape = 'u8[1024]{0}', space=vmem, size = 0x400, scoped, tag = 'output window, operand 0, single buffered']
    %20 = vsyncpa [#allocation3], 0
    %21 = vsyncpa [#allocation6], 0
    %22 = vsyncpa [#allocation9], 0
    %23 = vsyncpa [#allocation12], 0
    %24 = vsyncpa [#allocation4], 0
    // Predicated region
    $region2: #{tpu_custom_call.1} parent=1 // pred_check
      _
    $region3: #{tpu_custom_call.1} parent=1 // pred_check_branch
      %26 = sbr.rel (0) target = $region5
    $region4: #{tpu_custom_call.1} parent=1 // pred_region
      _
    $region5: #{tpu_custom_call.1} parent=1 // pred_fallthru
      _
    // Predicated region
    $region6: #{tpu_custom_call.1} parent=1 // pred_check
      _
    $region7: #{tpu_custom_call.1} parent=1 // pred_check_branch
      %28 = sbr.rel (0) target = $region9
    $region8: #{tpu_custom_call.1} parent=1 // pred_region
      %30 = vsyncadd [#allocation3], 0
      %s31 = sshll.u32 %s1, 4
      %s32 = int_to_ptr.hbm [resolvable:$true] %s31
      %s33 = sshll.u32 [#allocation2], 4
      %s34 = int_to_ptr.vmem [resolvable:$true] %s33
      %39 = dma.hbm_to_vmem [thread:$0]  %s32, 32, %s34, [#allocation3], 16, 16, 1
    $region9: #{tpu_custom_call.1} parent=1 // pred_fallthru
      _
    // Predicated region
    $region10: #{tpu_custom_call.1} parent=1 // pred_check
      _
    $region11: #{tpu_custom_call.1} parent=1 // pred_check_branch
      %41 = sbr.rel (0) target = $region13
    $region12: #{tpu_custom_call.1} parent=1 // pred_region
      _
    $region13: #{tpu_custom_call.1} parent=1 // pred_fallthru
      _
    // Predicated region
    $region14: #{tpu_custom_call.1} parent=1 // pred_check
      _
    $region15: #{tpu_custom_call.1} parent=1 // pred_check_branch
      %43 = sbr.rel (0) target = $region17
    $region16: #{tpu_custom_call.1} parent=1 // pred_region
      %45 = vsyncadd [#allocation6], 0
      %s46 = sshll.u32 %s3, 4
      %s47 = int_to_ptr.hbm [resolvable:$true] %s46
      %s48 = sshll.u32 [#allocation5], 4
      %s49 = int_to_ptr.vmem [resolvable:$true] %s48
      %54 = dma.hbm_to_vmem [thread:$0]  %s47, 3072, %s49, [#allocation6], 192, 192, 12
    $region17: #{tpu_custom_call.1} parent=1 // pred_fallthru
      _
    // Predicated region
    $region18: #{tpu_custom_call.1} parent=1 // pred_check
      _
    $region19: #{tpu_custom_call.1} parent=1 // pred_check_branch
      %56 = sbr.rel (0) target = $region21
    $region20: #{tpu_custom_call.1} parent=1 // pred_region
      %58 = vsyncadd [#allocation6], 0
      %s60 = sshll.u32 %s4, 4
      %s61 = int_to_ptr.hbm [resolvable:$true] %s60
      %s62 = sshll.u32 [#allocation7], 4
      %s63 = int_to_ptr.vmem [resolvable:$true] %s62
      %65 = dma.hbm_to_vmem [thread:$0]  %s61, 48, %s63, [#allocation6]
    $region21: #{tpu_custom_call.1} parent=1 // pred_fallthru
      _
    // Predicated region
    $region22: #{tpu_custom_call.1} parent=1 // pred_check
      _
    $region23: #{tpu_custom_call.1} parent=1 // pred_check_branch
      %67 = sbr.rel (0) target = $region25
    $region24: #{tpu_custom_call.1} parent=1 // pred_region
      %69 = vsyncadd [#allocation9], 0
      %s70 = sshll.u32 %s5, 4
      %s71 = int_to_ptr.hbm [resolvable:$true] %s70
      %s72 = sshll.u32 [#allocation8], 4
      %s73 = int_to_ptr.vmem [resolvable:$true] %s72
      %78 = dma.hbm_to_vmem [thread:$0]  %s71, 1024, %s73, [#allocation9], 64, 64, 4
    $region25: #{tpu_custom_call.1} parent=1 // pred_fallthru
      _
    // Predicated region
    $region26: #{tpu_custom_call.1} parent=1 // pred_check
      _
    $region27: #{tpu_custom_call.1} parent=1 // pred_check_branch
      %80 = sbr.rel (0) target = $region29
    $region28: #{tpu_custom_call.1} parent=1 // pred_region
      _
    $region29: #{tpu_custom_call.1} parent=1 // pred_fallthru
      _
    // Predicated region
    $region30: #{tpu_custom_call.1} parent=1 // pred_check
      _
    $region31: #{tpu_custom_call.1} parent=1 // pred_check_branch
      %82 = sbr.rel (0) target = $region33
    $region32: #{tpu_custom_call.1} parent=1 // pred_region
      _
    $region33: #{tpu_custom_call.1} parent=1 // pred_fallthru
      _
    // Predicated region
    $region34: #{tpu_custom_call.1} parent=1 // pred_check
      _
    $region35: #{tpu_custom_call.1} parent=1 // pred_check_branch
      %84 = sbr.rel (0) target = $region37
    $region36: #{tpu_custom_call.1} parent=1 // pred_region
      _
    $region37: #{tpu_custom_call.1} parent=1 // pred_fallthru
      _
    // Predicated region
    $region38: #{tpu_custom_call.1} parent=1 // pred_check
      _
    $region39: #{tpu_custom_call.1} parent=1 // pred_check_branch
      %86 = sbr.rel (0) target = $region41
    $region40: #{tpu_custom_call.1} parent=1 // pred_region
      %88 = vsyncadd [#allocation9], 0
      %s89 = sshll.u32 %s9, 4
      %s90 = int_to_ptr.hbm [resolvable:$true] %s89
      %s91 = sshll.u32 [#allocation10], 4
      %s92 = int_to_ptr.vmem [resolvable:$true] %s91
      %97 = dma.hbm_to_vmem [thread:$0]  %s90, 4096, %s92, [#allocation9], 256, 256, 16
    $region41: #{tpu_custom_call.1} parent=1 // pred_fallthru
      _
    // Predicated region
    $region42: #{tpu_custom_call.1} parent=1 // pred_check
      _
    $region43: #{tpu_custom_call.1} parent=1 // pred_check_branch
      %99 = sbr.rel (0) target = $region45
    $region44: #{tpu_custom_call.1} parent=1 // pred_region
      _
    $region45: #{tpu_custom_call.1} parent=1 // pred_fallthru
      _
    // Predicated region
    $region46: #{tpu_custom_call.1} parent=1 // pred_check
      _
    $region47: #{tpu_custom_call.1} parent=1 // pred_check_branch
      %101 = sbr.rel (0) target = $region49
    $region48: #{tpu_custom_call.1} parent=1 // pred_region
      %103 = vsyncadd [#allocation12], 0
      %s104 = sshll.u32 %s11, 4
      %s105 = int_to_ptr.hbm [resolvable:$true] %s104
      %s106 = sshll.u32 [#allocation11], 4
      %s107 = int_to_ptr.vmem [resolvable:$true] %s106
      %112 = dma.hbm_to_vmem [thread:$0]  %s105, 4096, %s107, [#allocation12], 64, 64, 4
    $region49: #{tpu_custom_call.1} parent=1 // pred_fallthru
      _
    // Predicated region
    $region50: #{tpu_custom_call.1} parent=1 // pred_check
      _
    $region51: #{tpu_custom_call.1} parent=1 // pred_check_branch
      %114 = sbr.rel (0) target = $region53
    $region52: #{tpu_custom_call.1} parent=1 // pred_region
      _
    $region53: #{tpu_custom_call.1} parent=1 // pred_fallthru
      _
    // Predicated region
    $region54: #{tpu_custom_call.1} parent=1 // pred_check
      _
    $region55: #{tpu_custom_call.1} parent=1 // pred_check_branch
      %116 = sbr.rel (0) target = $region57
    $region56: #{tpu_custom_call.1} parent=1 // pred_region
      _
    $region57: #{tpu_custom_call.1} parent=1 // pred_fallthru
      _
    // Predicated region
    $region58: #{tpu_custom_call.1} parent=1 // pred_check
      _
    $region59: #{tpu_custom_call.1} parent=1 // pred_check_branch
      %118 = sbr.rel (0) target = $region61
    $region60: #{tpu_custom_call.1} parent=1 // pred_region
      _
    $region61: #{tpu_custom_call.1} parent=1 // pred_fallthru
      _
    // Predicated region
    $region62: #{tpu_custom_call.1} parent=1 // pred_check
      _
    $region63: #{tpu_custom_call.1} parent=1 // pred_check_branch
      %120 = sbr.rel (0) target = $region65
    $region64: #{tpu_custom_call.1} parent=1 // pred_region
      %122 = dma.done [#allocation3], 32
    $region65: #{tpu_custom_call.1} parent=1 // pred_fallthru
      _
    // Predicated region
    $region66: #{tpu_custom_call.1} parent=1 // pred_check
      _
    $region67: #{tpu_custom_call.1} parent=1 // pred_check_branch
      %124 = sbr.rel (0) target = $region69
    $region68: #{tpu_custom_call.1} parent=1 // pred_region
      %126 = dma.done [#allocation6], 3072
    $region69: #{tpu_custom_call.1} parent=1 // pred_fallthru
      _
    // Predicated region
    $region70: #{tpu_custom_call.1} parent=1 // pred_check
      _
    $region71: #{tpu_custom_call.1} parent=1 // pred_check_branch
      %128 = sbr.rel (0) target = $region73
    $region72: #{tpu_custom_call.1} parent=1 // pred_region
      %130 = dma.done [#allocation6], 48
    $region73: #{tpu_custom_call.1} parent=1 // pred_fallthru
      _
    // Predicated region
    $region74: #{tpu_custom_call.1} parent=1 // pred_check
      _
    $region75: #{tpu_custom_call.1} parent=1 // pred_check_branch
      %132 = sbr.rel (0) target = $region77
    $region76: #{tpu_custom_call.1} parent=1 // pred_region
      %134 = dma.done [#allocation9], 1024
    $region77: #{tpu_custom_call.1} parent=1 // pred_fallthru
      _
    // Predicated region
    $region78: #{tpu_custom_call.1} parent=1 // pred_check
      _
    $region79: #{tpu_custom_call.1} parent=1 // pred_check_branch
      %136 = sbr.rel (0) target = $region81
    $region80: #{tpu_custom_call.1} parent=1 // pred_region
      %138 = dma.done [#allocation9], 4096
    $region81: #{tpu_custom_call.1} parent=1 // pred_fallthru
      _
    // Predicated region
    $region82: #{tpu_custom_call.1} parent=1 // pred_check
      _
    $region83: #{tpu_custom_call.1} parent=1 // pred_check_branch
      %140 = sbr.rel (0) target = $region85
    $region84: #{tpu_custom_call.1} parent=1 // pred_region
      %142 = dma.done [#allocation12], 4096
    $region85: #{tpu_custom_call.1} parent=1 // pred_fallthru
      _
    %v144 = vld [vmem:[%s0] sm:$0xff]
    %v145 = vld [vmem:[%s0 + $0x8] sm:$0xff]
    %v146 = vpack.c.bf16 %v145, %v144
    %v147 = vld [vmem:[#allocation5] sm:$0xff]
    %v148 = vld [vmem:[#allocation5 + $0x8] sm:$0xf]
    %v149 = vld [vmem:[#allocation5 + $0xc] sm:$0xff]
    %v150 = vld [vmem:[#allocation5 + $0x14] sm:$0xf]
    %v151 = vld [vmem:[#allocation5 + $0x18] sm:$0xff]
    %v152 = vld [vmem:[#allocation5 + $0x20] sm:$0xf]
    %v153 = vld [vmem:[#allocation5 + $0x24] sm:$0xff]
    %v154 = vld [vmem:[#allocation5 + $0x2c] sm:$0xf]
    %v155 = vld [vmem:[#allocation5 + $0x30] sm:$0xff]
    %v156 = vld [vmem:[#allocation5 + $0x38] sm:$0xf]
    %v157 = vld [vmem:[#allocation5 + $0x3c] sm:$0xff]
    %v158 = vld [vmem:[#allocation5 + $0x44] sm:$0xf]
    %v159 = vld [vmem:[#allocation5 + $0x48] sm:$0xff]
    %v160 = vld [vmem:[#allocation5 + $0x50] sm:$0xf]
    %v161 = vld [vmem:[#allocation5 + $0x54] sm:$0xff]
    %v162 = vld [vmem:[#allocation5 + $0x5c] sm:$0xf]
    %v163 = vld [vmem:[#allocation5 + $0x60] sm:$0xff]
    %v164 = vld [vmem:[#allocation5 + $0x68] sm:$0xf]
    %v165 = vld [vmem:[#allocation5 + $0x6c] sm:$0xff]
    %v166 = vld [vmem:[#allocation5 + $0x74] sm:$0xf]
    %v167 = vld [vmem:[#allocation5 + $0x78] sm:$0xff]
    %v168 = vld [vmem:[#allocation5 + $0x80] sm:$0xf]
    %v169 = vld [vmem:[#allocation5 + $0x84] sm:$0xff]
    %v170 = vld [vmem:[#allocation5 + $0x8c] sm:$0xf]
    %v171 = vld [vmem:[#allocation5 + $0x90] sm:$0xff]
    %v172 = vld [vmem:[#allocation5 + $0x98] sm:$0xf]
    %v173 = vld [vmem:[#allocation5 + $0x9c] sm:$0xff]
    %v174 = vld [vmem:[#allocation5 + $0xa4] sm:$0xf]
    %v175 = vld [vmem:[#allocation5 + $0xa8] sm:$0xff]
    %v176 = vld [vmem:[#allocation5 + $0xb0] sm:$0xf]
    %v177 = vld [vmem:[#allocation5 + $0xb4] sm:$0xff]
    %v178 = vld [vmem:[#allocation5 + $0xbc] sm:$0xf]
    %v179 = vld [vmem:[#allocation7] sm:$0x7]
    %v181 = vperm.slane %v179, 0
    %v182 = vperm.slane %v179, 1
    %v183 = vperm.slane %v179, 2
    %v219 = vunpack.c.l.b16 %v147
    %v220 = vunpack.c.h.b16 %v147
    %v221 = vunpack.c.l.b16 %v148
    %v222 = vunpack.c.l.b16 %v149
    %v223 = vunpack.c.h.b16 %v149
    %v224 = vunpack.c.l.b16 %v150
    %v225 = vunpack.c.l.b16 %v151
    %v226 = vunpack.c.h.b16 %v151
    %v227 = vunpack.c.l.b16 %v152
    %v228 = vunpack.c.l.b16 %v153
    %v229 = vunpack.c.h.b16 %v153
    %v230 = vunpack.c.l.b16 %v154
    %v231 = vunpack.c.l.b16 %v155
    %v232 = vunpack.c.h.b16 %v155
    %v233 = vunpack.c.l.b16 %v156
    %v234 = vunpack.c.l.b16 %v157
    %v235 = vunpack.c.h.b16 %v157
    %v236 = vunpack.c.l.b16 %v158
    %v237 = vunpack.c.l.b16 %v159
    %v238 = vunpack.c.h.b16 %v159
    %v239 = vunpack.c.l.b16 %v160
    %v240 = vunpack.c.l.b16 %v161
    %v241 = vunpack.c.h.b16 %v161
    %v242 = vunpack.c.l.b16 %v162
    %v243 = vunpack.c.l.b16 %v163
    %v244 = vunpack.c.h.b16 %v163
    %v245 = vunpack.c.l.b16 %v164
    %v246 = vunpack.c.l.b16 %v165
    %v247 = vunpack.c.h.b16 %v165
    %v248 = vunpack.c.l.b16 %v166
    %v249 = vunpack.c.l.b16 %v167
    %v250 = vunpack.c.h.b16 %v167
    %v251 = vunpack.c.l.b16 %v168
    %v252 = vunpack.c.l.b16 %v169
    %v253 = vunpack.c.h.b16 %v169
    %v254 = vunpack.c.l.b16 %v170
    %v255 = vunpack.c.l.b16 %v171
    %v256 = vunpack.c.h.b16 %v171
    %v257 = vunpack.c.l.b16 %v172
    %v258 = vunpack.c.l.b16 %v173
    %v259 = vunpack.c.h.b16 %v173
    %v260 = vunpack.c.l.b16 %v174
    %v261 = vunpack.c.l.b16 %v175
    %v262 = vunpack.c.h.b16 %v175
    %v263 = vunpack.c.l.b16 %v176
    %v264 = vunpack.c.l.b16 %v177
    %v265 = vunpack.c.h.b16 %v177
    %v266 = vunpack.c.l.b16 %v178
    %v267 = vpack.c.b16 %v222, %v219
    %v268 = vpack.c.b16 %v223, %v220
    %v269 = vpack.c.b16 %v224, %v221
    %v270 = vpack.c.b16 %v228, %v225
    %v271 = vpack.c.b16 %v229, %v226
    %v272 = vpack.c.b16 %v230, %v227
    %v273 = vpack.c.b16 %v234, %v231
    %v274 = vpack.c.b16 %v235, %v232
    %v275 = vpack.c.b16 %v236, %v233
    %v276 = vpack.c.b16 %v240, %v237
    %v277 = vpack.c.b16 %v241, %v238
    %v278 = vpack.c.b16 %v242, %v239
    %v279 = vpack.c.b16 %v246, %v243
    %v280 = vpack.c.b16 %v247, %v244
    %v281 = vpack.c.b16 %v248, %v245
    %v282 = vpack.c.b16 %v252, %v249
    %v283 = vpack.c.b16 %v253, %v250
    %v284 = vpack.c.b16 %v254, %v251
    %v285 = vpack.c.b16 %v258, %v255
    %v286 = vpack.c.b16 %v259, %v256
    %v287 = vpack.c.b16 %v260, %v257
    %v288 = vpack.c.b16 %v264, %v261
    %v289 = vpack.c.b16 %v265, %v262
    %v290 = vpack.c.b16 %v266, %v263
    %315 = vmatpush.bf16.msra.mxu0 %v288
    %316 = vmatpush.bf16.msra.mxu0 %v285
    %317 = vmatpush.bf16.msra.mxu0 %v282
    %318 = vmatpush.bf16.msra.mxu0 %v279
    %319 = vmatpush.bf16.msra.mxu0 %v276
    %320 = vmatpush.bf16.msra.mxu0 %v273
    %321 = vmatpush.bf16.msra.mxu0 %v270
    %322 = vmatpush.bf16.msra.mxu0 %v267
    %323 = vmatmul.bf16.gmra.mxu0 %v146
    %v324 = vpop.f32.mrf.mxu0
    %v325 = vadd.f32 %v181, %v324
    %v326 = vpop.f32.mrf.mxu0
    %v327 = vadd.f32 %v181, %v326
    %328 = vdwg.mxu0
    %329 = vmatpush.bf16.msra.mxu0 %v289
    %330 = vmatpush.bf16.msra.mxu0 %v286
    %331 = vmatpush.bf16.msra.mxu0 %v283
    %332 = vmatpush.bf16.msra.mxu0 %v280
    %333 = vmatpush.bf16.msra.mxu0 %v277
    %334 = vmatpush.bf16.msra.mxu0 %v274
    %335 = vmatpush.bf16.msra.mxu0 %v271
    %336 = vmatpush.bf16.msra.mxu0 %v268
    %337 = vmatmul.bf16.gmra.mxu0 %v146
    %v338 = vpop.f32.mrf.mxu0
    %v339 = vadd.f32 %v182, %v338
    %v340 = vpop.f32.mrf.mxu0
    %v341 = vadd.f32 %v182, %v340
    %342 = vdwg.mxu0
    %343 = vmatpush.bf16.msra.mxu0 %v290
    %344 = vmatpush.bf16.msra.mxu0 %v287
    %345 = vmatpush.bf16.msra.mxu0 %v284
    %346 = vmatpush.bf16.msra.mxu0 %v281
    %347 = vmatpush.bf16.msra.mxu0 %v278
    %348 = vmatpush.bf16.msra.mxu0 %v275
    %349 = vmatpush.bf16.msra.mxu0 %v272
    %350 = vmatpush.bf16.msra.mxu0 %v269
    %351 = vmatmul.bf16.gmra.mxu0 %v146
    %v352 = vpop.f32.mrf.mxu0
    %v353 = vadd.f32 %v183, %v352
    %v354 = vpop.f32.mrf.mxu0
    %v355 = vadd.f32 %v183, %v354
    %356 = vdwg.mxu0
    %v357 = vpack.c.bf16 %v339, %v325
    %v358 = vpack.c.bf16 %v353, %v353
    %v359 = vpack.c.bf16 %v341, %v327
    %v360 = vpack.c.bf16 %v355, %v355
    %363 = vrot.lane.b32.xlu0 %v357, 64
    %v364 = vpop.permute.xlu0 %363
    %365 = vrot.lane.b32.xlu0 %v359, 64
    %v366 = vpop.permute.xlu0 %365
    %v367 = vrot.slane %v357, 4
    %v368 = vrot.slane %v359, 4
    %v369 = vrot.slane %v364, 4
    %v370 = vrot.slane %v366, 4
    %373 = vrot.lane.b32.xlu0 %v358, 64
    %v374 = vpop.permute.xlu0 %373
    %375 = vrot.lane.b32.xlu0 %v360, 64
    %v376 = vpop.permute.xlu0 %375
    %v377 = vld [vmem:[#allocation2] sm:$0x1]
    %v378 = vld [vmem:[#allocation2 + $0x1] sm:$0x1]
    %v379 = vsub.f32 %v377, 1.0
    %v380 = vsub.f32 %v378, 1.0
    %v381 = vmul.f32 %v379, 1e+09
    %v382 = vmul.f32 %v380, 1e+09
    %v385 = vperm.slane %v381, 0
    %v386 = vperm.slane %v382, 0
    %vm389 = vcmask 523264
    %v391 = vsel %vm389, %v357, 0
    %v394 = vsel %vm389, %v367, 0
    %396 = vmatpush.bf16.xpose.msra.mxu0 0
    %397 = vmatpush.bf16.xpose.msra.mxu0 0
    %398 = vmatpush.bf16.xpose.msra.mxu0 0
    %399 = vmatpush.bf16.xpose.msra.mxu0 0
    %400 = vmatpush.bf16.xpose.msra.mxu0 0
    %401 = vmatpush.bf16.xpose.msra.mxu0 0
    %402 = vmatpush.bf16.xpose.msra.mxu0 0
    %403 = vmatpush.bf16.xpose.msra.mxu0 %v394
    %404 = vmatmul.bf16.gmra.mxu0 %v391
    %v405 = vpop.f32.mrf.mxu0
    %v406 = vadd.f32 %v385, %v405
    %v407 = vpop.f32.mrf.mxu0
    %408 = vdwg.mxu0
    %v410 = vsel %vm389, %v359, 0
    %v413 = vsel %vm389, %v368, 0
    %415 = vmatpush.bf16.xpose.msra.mxu0 0
    %416 = vmatpush.bf16.xpose.msra.mxu0 0
    %417 = vmatpush.bf16.xpose.msra.mxu0 0
    %418 = vmatpush.bf16.xpose.msra.mxu0 0
    %419 = vmatpush.bf16.xpose.msra.mxu0 0
    %420 = vmatpush.bf16.xpose.msra.mxu0 0
    %421 = vmatpush.bf16.xpose.msra.mxu0 0
    %422 = vmatpush.bf16.xpose.msra.mxu0 %v413
    %423 = vmatmul.bf16.gmra.mxu0 %v410
    %v424 = vpop.f32.mrf.mxu0
    %v425 = vadd.f32 %v386, %v424
    %v426 = vpop.f32.mrf.mxu0
    %427 = vdwg.mxu0
    %v429 = vsel %vm389, %v364, 0
    %v432 = vsel %vm389, %v369, 0
    %434 = vmatpush.bf16.xpose.msra.mxu0 0
    %435 = vmatpush.bf16.xpose.msra.mxu0 0
    %436 = vmatpush.bf16.xpose.msra.mxu0 0
    %437 = vmatpush.bf16.xpose.msra.mxu0 0
    %438 = vmatpush.bf16.xpose.msra.mxu0 0
    %439 = vmatpush.bf16.xpose.msra.mxu0 0
    %440 = vmatpush.bf16.xpose.msra.mxu0 0
    %441 = vmatpush.bf16.xpose.msra.mxu0 %v432
    %442 = vmatmul.bf16.gmra.mxu0 %v429
    %v443 = vpop.f32.mrf.mxu0
    %v444 = vadd.f32 %v385, %v443
    %v445 = vpop.f32.mrf.mxu0
    %446 = vdwg.mxu0
    %v448 = vsel %vm389, %v366, 0
    %v451 = vsel %vm389, %v370, 0
    %453 = vmatpush.bf16.xpose.msra.mxu0 0
    %454 = vmatpush.bf16.xpose.msra.mxu0 0
    %455 = vmatpush.bf16.xpose.msra.mxu0 0
    %456 = vmatpush.bf16.xpose.msra.mxu0 0
    %457 = vmatpush.bf16.xpose.msra.mxu0 0
    %458 = vmatpush.bf16.xpose.msra.mxu0 0
    %459 = vmatpush.bf16.xpose.msra.mxu0 0
    %460 = vmatpush.bf16.xpose.msra.mxu0 %v451
    %461 = vmatmul.bf16.gmra.mxu0 %v448
    %v462 = vpop.f32.mrf.mxu0
    %v463 = vadd.f32 %v386, %v462
    %v464 = vpop.f32.mrf.mxu0
    %465 = vdwg.mxu0
    %vm466 = vcmask 64512
    %v467 = vsel %vm466, %v406, -inf
    %468 = vmax.xlane.f32.xlu0 %v467
    %v469 = vpop.xlane.xlu0 %468
    %v470 = vsel %vm466, %v425, -inf
    %471 = vmax.xlane.f32.xlu0 %v470
    %v472 = vpop.xlane.xlu0 %471
    %v473 = vsel %vm466, %v444, -inf
    %474 = vmax.xlane.f32.xlu0 %v473
    %v475 = vpop.xlane.xlu0 %474
    %v476 = vsel %vm466, %v463, -inf
    %477 = vmax.xlane.f32.xlu0 %v476
    %v478 = vpop.xlane.xlu0 %477
    %v479 = vsub.f32 %v406, %v469
    %v480 = vsub.f32 %v425, %v472
    %v481 = vsub.f32 %v444, %v475
    %v482 = vsub.f32 %v463, %v478
    %v483 = vmul.f32 %v479, 1.442695
    %v484 = vpow.pop %v483
    %v485 = vmul.f32 %v480, 1.442695
    %v486 = vpow.pop %v485
    %v487 = vmul.f32 %v481, 1.442695
    %v488 = vpow.pop %v487
    %v489 = vmul.f32 %v482, 1.442695
    %v490 = vpow.pop %v489
    %v491 = vsel %vm466, %v484, 0.0
    %492 = vadd.xlane.f32.xlu0 %v491
    %v493 = vpop.xlane.xlu0 %492
    %v494 = vsel %vm466, %v486, 0.0
    %495 = vadd.xlane.f32.xlu0 %v494
    %v496 = vpop.xlane.xlu0 %495
    %v497 = vsel %vm466, %v488, 0.0
    %498 = vadd.xlane.f32.xlu0 %v497
    %v499 = vpop.xlane.xlu0 %498
    %v500 = vsel %vm466, %v490, 0.0
    %501 = vadd.xlane.f32.xlu0 %v500
    %v502 = vpop.xlane.xlu0 %501
    %v503 = vrcp.pop %v493
    %v504 = vrcp.pop %v496
    %v505 = vrcp.pop %v499
    %v506 = vrcp.pop %v502
    %v507 = vmul.f32 %v484, %v503
    %v508 = vmul.f32 %v486, %v504
    %v509 = vmul.f32 %v488, %v505
    %v510 = vmul.f32 %v490, %v506
    %v511 = vpack.c.bf16 %v507, %v507
    %v512 = vpack.c.bf16 %v508, %v508
    %v513 = vpack.c.bf16 %v509, %v509
    %v514 = vpack.c.bf16 %v510, %v510
    %v516 = vsel %vm466, %v511, 0
    %vm518 = vcmask 1043456
    %v520 = vsel %vm518, %v358, 0
    %522 = vmatpush.bf16.msra.mxu0 0
    %523 = vmatpush.bf16.msra.mxu0 0
    %524 = vmatpush.bf16.msra.mxu0 0
    %525 = vmatpush.bf16.msra.mxu0 0
    %526 = vmatpush.bf16.msra.mxu0 0
    %527 = vmatpush.bf16.msra.mxu0 0
    %528 = vmatpush.bf16.msra.mxu0 0
    %529 = vmatpush.bf16.msra.mxu0 %v520
    %530 = vmatmul.bf16.gmra.mxu0 %v516
    %v531 = vpop.f32.mrf.mxu0
    %v532 = vadd.f32 0.0, %v531
    %v533 = vpop.f32.mrf.mxu0
    %534 = vdwg.mxu0
    %v536 = vsel %vm466, %v512, 0
    %v539 = vsel %vm518, %v360, 0
    %541 = vmatpush.bf16.msra.mxu0 0
    %542 = vmatpush.bf16.msra.mxu0 0
    %543 = vmatpush.bf16.msra.mxu0 0
    %544 = vmatpush.bf16.msra.mxu0 0
    %545 = vmatpush.bf16.msra.mxu0 0
    %546 = vmatpush.bf16.msra.mxu0 0
    %547 = vmatpush.bf16.msra.mxu0 0
    %548 = vmatpush.bf16.msra.mxu0 %v539
    %549 = vmatmul.bf16.gmra.mxu0 %v536
    %v550 = vpop.f32.mrf.mxu0
    %v551 = vadd.f32 0.0, %v550
    %v552 = vpop.f32.mrf.mxu0
    %553 = vdwg.mxu0
    %v555 = vsel %vm466, %v513, 0
    %v558 = vsel %vm518, %v374, 0
    %560 = vmatpush.bf16.msra.mxu0 0
    %561 = vmatpush.bf16.msra.mxu0 0
    %562 = vmatpush.bf16.msra.mxu0 0
    %563 = vmatpush.bf16.msra.mxu0 0
    %564 = vmatpush.bf16.msra.mxu0 0
    %565 = vmatpush.bf16.msra.mxu0 0
    %566 = vmatpush.bf16.msra.mxu0 0
    %567 = vmatpush.bf16.msra.mxu0 %v558
    %568 = vmatmul.bf16.gmra.mxu0 %v555
    %v569 = vpop.f32.mrf.mxu0
    %v570 = vadd.f32 0.0, %v569
    %v571 = vpop.f32.mrf.mxu0
    %572 = vdwg.mxu0
    %v574 = vsel %vm466, %v514, 0
    %v577 = vsel %vm518, %v376, 0
    %579 = vmatpush.bf16.msra.mxu0 0
    %580 = vmatpush.bf16.msra.mxu0 0
    %581 = vmatpush.bf16.msra.mxu0 0
    %582 = vmatpush.bf16.msra.mxu0 0
    %583 = vmatpush.bf16.msra.mxu0 0
    %584 = vmatpush.bf16.msra.mxu0 0
    %585 = vmatpush.bf16.msra.mxu0 0
    %586 = vmatpush.bf16.msra.mxu0 %v577
    %587 = vmatmul.bf16.gmra.mxu0 %v574
    %v588 = vpop.f32.mrf.mxu0
    %v589 = vadd.f32 0.0, %v588
    %v590 = vpop.f32.mrf.mxu0
    %591 = vdwg.mxu0
    %v592 = vpack.c.bf16 %v532, %v532
    %v593 = vpack.c.bf16 %v551, %v551
    %v594 = vpack.c.bf16 %v570, %v570
    %v595 = vpack.c.bf16 %v589, %v589
    %v598 = vunpack.c.l.b16 %v592
    %v599 = vunpack.c.l.b16 %v593
    %v600 = vpack.c.b16 %v599, %v598
    %v603 = vunpack.c.l.b16 %v594
    %v604 = vunpack.c.l.b16 %v595
    %v605 = vpack.c.b16 %v604, %v603
    %606 = vrot.lane.b32.xlu0 %v605, 64
    %v607 = vpop.permute.xlu0 %606
    %v610 = vsel %vm389, %v600, %v607
    %v612 = vld [vmem:[#allocation8] sm:$0xf]
    %v613 = vld [vmem:[#allocation8 + $0x4] sm:$0xf]
    %v614 = vld [vmem:[#allocation8 + $0x8] sm:$0xf]
    %v615 = vld [vmem:[#allocation8 + $0xc] sm:$0xf]
    %v616 = vld [vmem:[#allocation8 + $0x10] sm:$0xf]
    %v617 = vld [vmem:[#allocation8 + $0x14] sm:$0xf]
    %v618 = vld [vmem:[#allocation8 + $0x18] sm:$0xf]
    %v619 = vld [vmem:[#allocation8 + $0x1c] sm:$0xf]
    %v620 = vld [vmem:[#allocation8 + $0x20] sm:$0xf]
    %v621 = vld [vmem:[#allocation8 + $0x24] sm:$0xf]
    %v622 = vld [vmem:[#allocation8 + $0x28] sm:$0xf]
    %v623 = vld [vmem:[#allocation8 + $0x2c] sm:$0xf]
    %v624 = vld [vmem:[#allocation8 + $0x30] sm:$0xf]
    %v625 = vld [vmem:[#allocation8 + $0x34] sm:$0xf]
    %v626 = vld [vmem:[#allocation8 + $0x38] sm:$0xf]
    %v627 = vld [vmem:[#allocation8 + $0x3c] sm:$0xf]
    %v628 = vld [vmem:[%s6] sm:$0x1]
    %v630 = vperm.slane %v628, 0
    %v648 = vunpack.c.l.b16 %v612
    %v649 = vunpack.c.l.b16 %v613
    %v650 = vunpack.c.l.b16 %v614
    %v651 = vunpack.c.l.b16 %v615
    %v652 = vunpack.c.l.b16 %v616
    %v653 = vunpack.c.l.b16 %v617
    %v654 = vunpack.c.l.b16 %v618
    %v655 = vunpack.c.l.b16 %v619
    %v656 = vunpack.c.l.b16 %v620
    %v657 = vunpack.c.l.b16 %v621
    %v658 = vunpack.c.l.b16 %v622
    %v659 = vunpack.c.l.b16 %v623
    %v660 = vunpack.c.l.b16 %v624
    %v661 = vunpack.c.l.b16 %v625
    %v662 = vunpack.c.l.b16 %v626
    %v663 = vunpack.c.l.b16 %v627
    %v664 = vpack.c.b16 %v649, %v648
    %v665 = vpack.c.b16 %v651, %v650
    %v666 = vpack.c.b16 %v653, %v652
    %v667 = vpack.c.b16 %v655, %v654
    %v668 = vpack.c.b16 %v657, %v656
    %v669 = vpack.c.b16 %v659, %v658
    %v670 = vpack.c.b16 %v661, %v660
    %v671 = vpack.c.b16 %v663, %v662
    %680 = vmatpush.bf16.msra.mxu0 %v671
    %681 = vmatpush.bf16.msra.mxu0 %v670
    %682 = vmatpush.bf16.msra.mxu0 %v669
    %683 = vmatpush.bf16.msra.mxu0 %v668
    %684 = vmatpush.bf16.msra.mxu0 %v667
    %685 = vmatpush.bf16.msra.mxu0 %v666
    %686 = vmatpush.bf16.msra.mxu0 %v665
    %687 = vmatpush.bf16.msra.mxu0 %v664
    %688 = vmatmul.bf16.gmra.mxu0 %v610
    %v689 = vpop.f32.mrf.mxu0
    %v690 = vadd.f32 %v630, %v689
    %v691 = vpop.f32.mrf.mxu0
    %v692 = vadd.f32 %v630, %v691
    %693 = vdwg.mxu0
    %v694 = vadd.f32 %v144, %v690
    %v695 = vadd.f32 %v145, %v692
    %v696 = vld [vmem:[%s7] sm:$0x1]
    %v697 = vld [vmem:[%s8] sm:$0x1]
    %698 = vadd.xlane.f32.xlu0 %v694
    %v699 = vpop.xlane.xlu0 %698
    %700 = vadd.xlane.f32.xlu0 %v695
    %v701 = vpop.xlane.xlu0 %700
    %v702 = vrcp.pop 128.0
    %v703 = vmul.f32 128.0, %v702
    %v704 = vsub.f32 1.0, %v703
    %v705 = vmul.f32 %v702, %v704
    %v706 = vadd.f32 %v702, %v705
    %vm707 = vweird.f32 %v702
    %v708 = vsel %vm707, %v702, %v706
    %v709 = vmul.f32 %v699, %v708
    %v710 = vmul.f32 %v701, %v708
    %v711 = vmul.f32 %v694, %v694
    %v712 = vmul.f32 %v695, %v695
    %713 = vadd.xlane.f32.xlu0 %v711
    %v714 = vpop.xlane.xlu0 %713
    %715 = vadd.xlane.f32.xlu0 %v712
    %v716 = vpop.xlane.xlu0 %715
    %v717 = vmul.f32 %v714, %v708
    %v718 = vmul.f32 %v716, %v708
    %v719 = vmul.f32 %v709, %v709
    %v720 = vmul.f32 %v710, %v710
    %v721 = vsub.f32 %v717, %v719
    %v722 = vsub.f32 %v718, %v720
    %v723 = vmax.f32 %v721, 0.0
    %v724 = vmax.f32 %v722, 0.0
    %v725 = vsub.f32 %v694, %v709
    %v726 = vsub.f32 %v695, %v710
    %v727 = vadd.f32 %v723, 1e-12
    %v728 = vadd.f32 %v724, 1e-12
    %v729 = vrsqrt.pop %v727
    %v730 = vmul.f32 %v729, %v727
    %v731 = vmul.f32 %v730, %v729
    %v732 = vmul.f32 0.5, %v731
    %v733 = vsub.f32 1.5, %v732
    %v734 = vmul.f32 %v729, %v733
    %vm735 = vweird.f32 %v727
    %vm736 = vweird.f32 %v729
    %vm737 = vmor %vm735, %vm736
    %v738 = vsel %vm737, %v729, %v734
    %v739 = vrsqrt.pop %v728
    %v740 = vmul.f32 %v739, %v728
    %v741 = vmul.f32 %v740, %v739
    %v742 = vmul.f32 0.5, %v741
    %v743 = vsub.f32 1.5, %v742
    %v744 = vmul.f32 %v739, %v743
    %vm745 = vweird.f32 %v728
    %vm746 = vweird.f32 %v739
    %vm747 = vmor %vm745, %vm746
    %v748 = vsel %vm747, %v739, %v744
    %v749 = vmul.f32 %v725, %v738
    %v750 = vmul.f32 %v726, %v748
    %v752 = vperm.slane %v696, 0
    %v754 = vmul.f32 %v749, %v752
    %v755 = vmul.f32 %v750, %v752
    %v757 = vperm.slane %v697, 0
    %v759 = vadd.f32 %v754, %v757
    %v760 = vadd.f32 %v755, %v757
    %v761 = vpack.c.bf16 %v760, %v759
    %v762 = vld [vmem:[#allocation10] sm:$0xff]
    %v763 = vld [vmem:[#allocation10 + $0x8] sm:$0xff]
    %v764 = vld [vmem:[#allocation10 + $0x10] sm:$0xff]
    %v765 = vld [vmem:[#allocation10 + $0x18] sm:$0xff]
    %v766 = vld [vmem:[#allocation10 + $0x20] sm:$0xff]
    %v767 = vld [vmem:[#allocation10 + $0x28] sm:$0xff]
    %v768 = vld [vmem:[#allocation10 + $0x30] sm:$0xff]
    %v769 = vld [vmem:[#allocation10 + $0x38] sm:$0xff]
    %v770 = vld [vmem:[#allocation10 + $0x40] sm:$0xff]
    %v771 = vld [vmem:[#allocation10 + $0x48] sm:$0xff]
    %v772 = vld [vmem:[#allocation10 + $0x50] sm:$0xff]
    %v773 = vld [vmem:[#allocation10 + $0x58] sm:$0xff]
    %v774 = vld [vmem:[#allocation10 + $0x60] sm:$0xff]
    %v775 = vld [vmem:[#allocation10 + $0x68] sm:$0xff]
    %v776 = vld [vmem:[#allocation10 + $0x70] sm:$0xff]
    %v777 = vld [vmem:[#allocation10 + $0x78] sm:$0xff]
    %v778 = vld [vmem:[#allocation10 + $0x80] sm:$0xff]
    %v779 = vld [vmem:[#allocation10 + $0x88] sm:$0xff]
    %v780 = vld [vmem:[#allocation10 + $0x90] sm:$0xff]
    %v781 = vld [vmem:[#allocation10 + $0x98] sm:$0xff]
    %v782 = vld [vmem:[#allocation10 + $0xa0] sm:$0xff]
    %v783 = vld [vmem:[#allocation10 + $0xa8] sm:$0xff]
    %v784 = vld [vmem:[#allocation10 + $0xb0] sm:$0xff]
    %v785 = vld [vmem:[#allocation10 + $0xb8] sm:$0xff]
    %v786 = vld [vmem:[#allocation10 + $0xc0] sm:$0xff]
    %v787 = vld [vmem:[#allocation10 + $0xc8] sm:$0xff]
    %v788 = vld [vmem:[#allocation10 + $0xd0] sm:$0xff]
    %v789 = vld [vmem:[#allocation10 + $0xd8] sm:$0xff]
    %v790 = vld [vmem:[#allocation10 + $0xe0] sm:$0xff]
    %v791 = vld [vmem:[#allocation10 + $0xe8] sm:$0xff]
    %v792 = vld [vmem:[#allocation10 + $0xf0] sm:$0xff]
    %v793 = vld [vmem:[#allocation10 + $0xf8] sm:$0xff]
    %v794 = vld [vmem:[%s10] sm:$0xf]
    %v796 = vperm.slane %v794, 0
    %v797 = vperm.slane %v794, 1
    %v798 = vperm.slane %v794, 2
    %v799 = vperm.slane %v794, 3
    %v836 = vunpack.c.l.b16 %v762
    %v837 = vunpack.c.h.b16 %v762
    %v838 = vunpack.c.l.b16 %v763
    %v839 = vunpack.c.h.b16 %v763
    %v840 = vunpack.c.l.b16 %v764
    %v841 = vunpack.c.h.b16 %v764
    %v842 = vunpack.c.l.b16 %v765
    %v843 = vunpack.c.h.b16 %v765
    %v844 = vunpack.c.l.b16 %v766
    %v845 = vunpack.c.h.b16 %v766
    %v846 = vunpack.c.l.b16 %v767
    %v847 = vunpack.c.h.b16 %v767
    %v848 = vunpack.c.l.b16 %v768
    %v849 = vunpack.c.h.b16 %v768
    %v850 = vunpack.c.l.b16 %v769
    %v851 = vunpack.c.h.b16 %v769
    %v852 = vunpack.c.l.b16 %v770
    %v853 = vunpack.c.h.b16 %v770
    %v854 = vunpack.c.l.b16 %v771
    %v855 = vunpack.c.h.b16 %v771
    %v856 = vunpack.c.l.b16 %v772
    %v857 = vunpack.c.h.b16 %v772
    %v858 = vunpack.c.l.b16 %v773
    %v859 = vunpack.c.h.b16 %v773
    %v860 = vunpack.c.l.b16 %v774
    %v861 = vunpack.c.h.b16 %v774
    %v862 = vunpack.c.l.b16 %v775
    %v863 = vunpack.c.h.b16 %v775
    %v864 = vunpack.c.l.b16 %v776
    %v865 = vunpack.c.h.b16 %v776
    %v866 = vunpack.c.l.b16 %v777
    %v867 = vunpack.c.h.b16 %v777
    %v868 = vunpack.c.l.b16 %v778
    %v869 = vunpack.c.h.b16 %v778
    %v870 = vunpack.c.l.b16 %v779
    %v871 = vunpack.c.h.b16 %v779
    %v872 = vunpack.c.l.b16 %v780
    %v873 = vunpack.c.h.b16 %v780
    %v874 = vunpack.c.l.b16 %v781
    %v875 = vunpack.c.h.b16 %v781
    %v876 = vunpack.c.l.b16 %v782
    %v877 = vunpack.c.h.b16 %v782
    %v878 = vunpack.c.l.b16 %v783
    %v879 = vunpack.c.h.b16 %v783
    %v880 = vunpack.c.l.b16 %v784
    %v881 = vunpack.c.h.b16 %v784
    %v882 = vunpack.c.l.b16 %v785
    %v883 = vunpack.c.h.b16 %v785
    %v884 = vunpack.c.l.b16 %v786
    %v885 = vunpack.c.h.b16 %v786
    %v886 = vunpack.c.l.b16 %v787
    %v887 = vunpack.c.h.b16 %v787
    %v888 = vunpack.c.l.b16 %v788
    %v889 = vunpack.c.h.b16 %v788
    %v890 = vunpack.c.l.b16 %v789
    %v891 = vunpack.c.h.b16 %v789
    %v892 = vunpack.c.l.b16 %v790
    %v893 = vunpack.c.h.b16 %v790
    %v894 = vunpack.c.l.b16 %v791
    %v895 = vunpack.c.h.b16 %v791
    %v896 = vunpack.c.l.b16 %v792
    %v897 = vunpack.c.h.b16 %v792
    %v898 = vunpack.c.l.b16 %v793
    %v899 = vunpack.c.h.b16 %v793
    %v900 = vpack.c.b16 %v840, %v836
    %v901 = vpack.c.b16 %v841, %v837
    %v902 = vpack.c.b16 %v842, %v838
    %v903 = vpack.c.b16 %v843, %v839
    %v904 = vpack.c.b16 %v848, %v844
    %v905 = vpack.c.b16 %v849, %v845
    %v906 = vpack.c.b16 %v850, %v846
    %v907 = vpack.c.b16 %v851, %v847
    %v908 = vpack.c.b16 %v856, %v852
    %v909 = vpack.c.b16 %v857, %v853
    %v910 = vpack.c.b16 %v858, %v854
    %v911 = vpack.c.b16 %v859, %v855
    %v912 = vpack.c.b16 %v864, %v860
    %v913 = vpack.c.b16 %v865, %v861
    %v914 = vpack.c.b16 %v866, %v862
    %v915 = vpack.c.b16 %v867, %v863
    %v916 = vpack.c.b16 %v872, %v868
    %v917 = vpack.c.b16 %v873, %v869
    %v918 = vpack.c.b16 %v874, %v870
    %v919 = vpack.c.b16 %v875, %v871
    %v920 = vpack.c.b16 %v880, %v876
    %v921 = vpack.c.b16 %v881, %v877
    %v922 = vpack.c.b16 %v882, %v878
    %v923 = vpack.c.b16 %v883, %v879
    %v924 = vpack.c.b16 %v888, %v884
    %v925 = vpack.c.b16 %v889, %v885
    %v926 = vpack.c.b16 %v890, %v886
    %v927 = vpack.c.b16 %v891, %v887
    %v928 = vpack.c.b16 %v896, %v892
    %v929 = vpack.c.b16 %v897, %v893
    %v930 = vpack.c.b16 %v898, %v894
    %v931 = vpack.c.b16 %v899, %v895
    %964 = vmatpush.bf16.msra.mxu0 %v928
    %965 = vmatpush.bf16.msra.mxu0 %v924
    %966 = vmatpush.bf16.msra.mxu0 %v920
    %967 = vmatpush.bf16.msra.mxu0 %v916
    %968 = vmatpush.bf16.msra.mxu0 %v912
    %969 = vmatpush.bf16.msra.mxu0 %v908
    %970 = vmatpush.bf16.msra.mxu0 %v904
    %971 = vmatpush.bf16.msra.mxu0 %v900
    %972 = vmatmul.bf16.gmra.mxu0 %v761
    %v973 = vpop.f32.mrf.mxu0
    %v974 = vadd.f32 %v796, %v973
    %v975 = vpop.f32.mrf.mxu0
    %v976 = vadd.f32 %v796, %v975
    %977 = vdwg.mxu0
    %978 = vmatpush.bf16.msra.mxu0 %v929
    %979 = vmatpush.bf16.msra.mxu0 %v925
    %980 = vmatpush.bf16.msra.mxu0 %v921
    %981 = vmatpush.bf16.msra.mxu0 %v917
    %982 = vmatpush.bf16.msra.mxu0 %v913
    %983 = vmatpush.bf16.msra.mxu0 %v909
    %984 = vmatpush.bf16.msra.mxu0 %v905
    %985 = vmatpush.bf16.msra.mxu0 %v901
    %986 = vmatmul.bf16.gmra.mxu0 %v761
    %v987 = vpop.f32.mrf.mxu0
    %v988 = vadd.f32 %v797, %v987
    %v989 = vpop.f32.mrf.mxu0
    %v990 = vadd.f32 %v797, %v989
    %991 = vdwg.mxu0
    %992 = vmatpush.bf16.msra.mxu0 %v930
    %993 = vmatpush.bf16.msra.mxu0 %v926
    %994 = vmatpush.bf16.msra.mxu0 %v922
    %995 = vmatpush.bf16.msra.mxu0 %v918
    %996 = vmatpush.bf16.msra.mxu0 %v914
    %997 = vmatpush.bf16.msra.mxu0 %v910
    %998 = vmatpush.bf16.msra.mxu0 %v906
    %999 = vmatpush.bf16.msra.mxu0 %v902
    %1000 = vmatmul.bf16.gmra.mxu0 %v761
    %v1001 = vpop.f32.mrf.mxu0
    %v1002 = vadd.f32 %v798, %v1001
    %v1003 = vpop.f32.mrf.mxu0
    %v1004 = vadd.f32 %v798, %v1003
    %1005 = vdwg.mxu0
    %1006 = vmatpush.bf16.msra.mxu0 %v931
    %1007 = vmatpush.bf16.msra.mxu0 %v927
    %1008 = vmatpush.bf16.msra.mxu0 %v923
    %1009 = vmatpush.bf16.msra.mxu0 %v919
    %1010 = vmatpush.bf16.msra.mxu0 %v915
    %1011 = vmatpush.bf16.msra.mxu0 %v911
    %1012 = vmatpush.bf16.msra.mxu0 %v907
    %1013 = vmatpush.bf16.msra.mxu0 %v903
    %1014 = vmatmul.bf16.gmra.mxu0 %v761
    %v1015 = vpop.f32.mrf.mxu0
    %v1016 = vadd.f32 %v799, %v1015
    %v1017 = vpop.f32.mrf.mxu0
    %v1018 = vadd.f32 %v799, %v1017
    %1019 = vdwg.mxu0
    %v1020 = vmul.f32 %v974, %v974
    %v1021 = vmul.f32 %v988, %v988
    %v1022 = vmul.f32 %v1002, %v1002
    %v1023 = vmul.f32 %v1016, %v1016
    %v1024 = vmul.f32 %v976, %v976
    %v1025 = vmul.f32 %v990, %v990
    %v1026 = vmul.f32 %v1004, %v1004
    %v1027 = vmul.f32 %v1018, %v1018
    %v1028 = vmul.f32 %v974, %v1020
    %v1029 = vmul.f32 %v988, %v1021
    %v1030 = vmul.f32 %v1002, %v1022
    %v1031 = vmul.f32 %v1016, %v1023
    %v1032 = vmul.f32 %v976, %v1024
    %v1033 = vmul.f32 %v990, %v1025
    %v1034 = vmul.f32 %v1004, %v1026
    %v1035 = vmul.f32 %v1018, %v1027
    %v1036 = vmul.f32 %v1028, 0.044715
    %v1037 = vmul.f32 %v1029, 0.044715
    %v1038 = vmul.f32 %v1030, 0.044715
    %v1039 = vmul.f32 %v1031, 0.044715
    %v1040 = vmul.f32 %v1032, 0.044715
    %v1041 = vmul.f32 %v1033, 0.044715
    %v1042 = vmul.f32 %v1034, 0.044715
    %v1043 = vmul.f32 %v1035, 0.044715
    %v1044 = vadd.f32 %v974, %v1036
    %v1045 = vadd.f32 %v988, %v1037
    %v1046 = vadd.f32 %v1002, %v1038
    %v1047 = vadd.f32 %v1016, %v1039
    %v1048 = vadd.f32 %v976, %v1040
    %v1049 = vadd.f32 %v990, %v1041
    %v1050 = vadd.f32 %v1004, %v1042
    %v1051 = vadd.f32 %v1018, %v1043
    %v1052 = vmul.f32 %v1044, 0.7978846
    %v1053 = vmul.f32 %v1045, 0.7978846
    %v1054 = vmul.f32 %v1046, 0.7978846
    %v1055 = vmul.f32 %v1047, 0.7978846
    %v1056 = vmul.f32 %v1048, 0.7978846
    %v1057 = vmul.f32 %v1049, 0.7978846
    %v1058 = vmul.f32 %v1050, 0.7978846
    %v1059 = vmul.f32 %v1051, 0.7978846
    %v1060 = vtanh.pop %v1052
    %v1061 = vtanh.pop %v1053
    %v1062 = vtanh.pop %v1054
    %v1063 = vtanh.pop %v1055
    %v1064 = vtanh.pop %v1056
    %v1065 = vtanh.pop %v1057
    %v1066 = vtanh.pop %v1058
    %v1067 = vtanh.pop %v1059
    %v1068 = vadd.f32 %v1060, 1.0
    %v1069 = vadd.f32 %v1061, 1.0
    %v1070 = vadd.f32 %v1062, 1.0
    %v1071 = vadd.f32 %v1063, 1.0
    %v1072 = vadd.f32 %v1064, 1.0
    %v1073 = vadd.f32 %v1065, 1.0
    %v1074 = vadd.f32 %v1066, 1.0
    %v1075 = vadd.f32 %v1067, 1.0
    %v1076 = vmul.f32 %v1068, 0.5
    %v1077 = vmul.f32 %v1069, 0.5
    %v1078 = vmul.f32 %v1070, 0.5
    %v1079 = vmul.f32 %v1071, 0.5
    %v1080 = vmul.f32 %v1072, 0.5
    %v1081 = vmul.f32 %v1073, 0.5
    %v1082 = vmul.f32 %v1074, 0.5
    %v1083 = vmul.f32 %v1075, 0.5
    %v1084 = vmul.f32 %v974, %v1076
    %v1085 = vmul.f32 %v988, %v1077
    %v1086 = vmul.f32 %v1002, %v1078
    %v1087 = vmul.f32 %v1016, %v1079
    %v1088 = vmul.f32 %v976, %v1080
    %v1089 = vmul.f32 %v990, %v1081
    %v1090 = vmul.f32 %v1004, %v1082
    %v1091 = vmul.f32 %v1018, %v1083
    %v1092 = vpack.c.bf16 %v1088, %v1084
    %v1093 = vpack.c.bf16 %v1089, %v1085
    %v1094 = vpack.c.bf16 %v1090, %v1086
    %v1095 = vpack.c.bf16 %v1091, %v1087
    %v1096 = vld [vmem:[#allocation11] sm:$0xf]
    %v1097 = vld [vmem:[#allocation11 + $0x4] sm:$0xf]
    %v1098 = vld [vmem:[#allocation11 + $0x8] sm:$0xf]
    %v1099 = vld [vmem:[#allocation11 + $0xc] sm:$0xf]
    %v1100 = vld [vmem:[#allocation11 + $0x10] sm:$0xf]
    %v1101 = vld [vmem:[#allocation11 + $0x14] sm:$0xf]
    %v1102 = vld [vmem:[#allocation11 + $0x18] sm:$0xf]
    %v1103 = vld [vmem:[#allocation11 + $0x1c] sm:$0xf]
    %v1104 = vld [vmem:[#allocation11 + $0x20] sm:$0xf]
    %v1105 = vld [vmem:[#allocation11 + $0x24] sm:$0xf]
    %v1106 = vld [vmem:[#allocation11 + $0x28] sm:$0xf]
    %v1107 = vld [vmem:[#allocation11 + $0x2c] sm:$0xf]
    %v1108 = vld [vmem:[#allocation11 + $0x30] sm:$0xf]
    %v1109 = vld [vmem:[#allocation11 + $0x34] sm:$0xf]
    %v1110 = vld [vmem:[#allocation11 + $0x38] sm:$0xf]
    %v1111 = vld [vmem:[#allocation11 + $0x3c] sm:$0xf]
    %v1112 = vld [vmem:[#allocation11 + $0x40] sm:$0xf]
    %v1113 = vld [vmem:[#allocation11 + $0x44] sm:$0xf]
    %v1114 = vld [vmem:[#allocation11 + $0x48] sm:$0xf]
    %v1115 = vld [vmem:[#allocation11 + $0x4c] sm:$0xf]
    %v1116 = vld [vmem:[#allocation11 + $0x50] sm:$0xf]
    %v1117 = vld [vmem:[#allocation11 + $0x54] sm:$0xf]
    %v1118 = vld [vmem:[#allocation11 + $0x58] sm:$0xf]
    %v1119 = vld [vmem:[#allocation11 + $0x5c] sm:$0xf]
    %v1120 = vld [vmem:[#allocation11 + $0x60] sm:$0xf]
    %v1121 = vld [vmem:[#allocation11 + $0x64] sm:$0xf]
    %v1122 = vld [vmem:[#allocation11 + $0x68] sm:$0xf]
    %v1123 = vld [vmem:[#allocation11 + $0x6c] sm:$0xf]
    %v1124 = vld [vmem:[#allocation11 + $0x70] sm:$0xf]
    %v1125 = vld [vmem:[#allocation11 + $0x74] sm:$0xf]
    %v1126 = vld [vmem:[#allocation11 + $0x78] sm:$0xf]
    %v1127 = vld [vmem:[#allocation11 + $0x7c] sm:$0xf]
    %v1128 = vld [vmem:[#allocation11 + $0x80] sm:$0xf]
    %v1129 = vld [vmem:[#allocation11 + $0x84] sm:$0xf]
    %v1130 = vld [vmem:[#allocation11 + $0x88] sm:$0xf]
    %v1131 = vld [vmem:[#allocation11 + $0x8c] sm:$0xf]
    %v1132 = vld [vmem:[#allocation11 + $0x90] sm:$0xf]
    %v1133 = vld [vmem:[#allocation11 + $0x94] sm:$0xf]
    %v1134 = vld [vmem:[#allocation11 + $0x98] sm:$0xf]
    %v1135 = vld [vmem:[#allocation11 + $0x9c] sm:$0xf]
    %v1136 = vld [vmem:[#allocation11 + $0xa0] sm:$0xf]
    %v1137 = vld [vmem:[#allocation11 + $0xa4] sm:$0xf]
    %v1138 = vld [vmem:[#allocation11 + $0xa8] sm:$0xf]
    %v1139 = vld [vmem:[#allocation11 + $0xac] sm:$0xf]
    %v1140 = vld [vmem:[#allocation11 + $0xb0] sm:$0xf]
    %v1141 = vld [vmem:[#allocation11 + $0xb4] sm:$0xf]
    %v1142 = vld [vmem:[#allocation11 + $0xb8] sm:$0xf]
    %v1143 = vld [vmem:[#allocation11 + $0xbc] sm:$0xf]
    %v1144 = vld [vmem:[#allocation11 + $0xc0] sm:$0xf]
    %v1145 = vld [vmem:[#allocation11 + $0xc4] sm:$0xf]
    %v1146 = vld [vmem:[#allocation11 + $0xc8] sm:$0xf]
    %v1147 = vld [vmem:[#allocation11 + $0xcc] sm:$0xf]
    %v1148 = vld [vmem:[#allocation11 + $0xd0] sm:$0xf]
    %v1149 = vld [vmem:[#allocation11 + $0xd4] sm:$0xf]
    %v1150 = vld [vmem:[#allocation11 + $0xd8] sm:$0xf]
    %v1151 = vld [vmem:[#allocation11 + $0xdc] sm:$0xf]
    %v1152 = vld [vmem:[#allocation11 + $0xe0] sm:$0xf]
    %v1153 = vld [vmem:[#allocation11 + $0xe4] sm:$0xf]
    %v1154 = vld [vmem:[#allocation11 + $0xe8] sm:$0xf]
    %v1155 = vld [vmem:[#allocation11 + $0xec] sm:$0xf]
    %v1156 = vld [vmem:[#allocation11 + $0xf0] sm:$0xf]
    %v1157 = vld [vmem:[#allocation11 + $0xf4] sm:$0xf]
    %v1158 = vld [vmem:[#allocation11 + $0xf8] sm:$0xf]
    %v1159 = vld [vmem:[#allocation11 + $0xfc] sm:$0xf]
    %v1160 = vld [vmem:[%s12] sm:$0x1]
    %v1162 = vperm.slane %v1160, 0
    %v1228 = vunpack.c.l.b16 %v1096
    %v1229 = vunpack.c.l.b16 %v1097
    %v1230 = vunpack.c.l.b16 %v1098
    %v1231 = vunpack.c.l.b16 %v1099
    %v1232 = vunpack.c.l.b16 %v1100
    %v1233 = vunpack.c.l.b16 %v1101
    %v1234 = vunpack.c.l.b16 %v1102
    %v1235 = vunpack.c.l.b16 %v1103
    %v1236 = vunpack.c.l.b16 %v1104
    %v1237 = vunpack.c.l.b16 %v1105
    %v1238 = vunpack.c.l.b16 %v1106
    %v1239 = vunpack.c.l.b16 %v1107
    %v1240 = vunpack.c.l.b16 %v1108
    %v1241 = vunpack.c.l.b16 %v1109
    %v1242 = vunpack.c.l.b16 %v1110
    %v1243 = vunpack.c.l.b16 %v1111
    %v1244 = vunpack.c.l.b16 %v1112
    %v1245 = vunpack.c.l.b16 %v1113
    %v1246 = vunpack.c.l.b16 %v1114
    %v1247 = vunpack.c.l.b16 %v1115
    %v1248 = vunpack.c.l.b16 %v1116
    %v1249 = vunpack.c.l.b16 %v1117
    %v1250 = vunpack.c.l.b16 %v1118
    %v1251 = vunpack.c.l.b16 %v1119
    %v1252 = vunpack.c.l.b16 %v1120
    %v1253 = vunpack.c.l.b16 %v1121
    %v1254 = vunpack.c.l.b16 %v1122
    %v1255 = vunpack.c.l.b16 %v1123
    %v1256 = vunpack.c.l.b16 %v1124
    %v1257 = vunpack.c.l.b16 %v1125
    %v1258 = vunpack.c.l.b16 %v1126
    %v1259 = vunpack.c.l.b16 %v1127
    %v1260 = vunpack.c.l.b16 %v1128
    %v1261 = vunpack.c.l.b16 %v1129
    %v1262 = vunpack.c.l.b16 %v1130
    %v1263 = vunpack.c.l.b16 %v1131
    %v1264 = vunpack.c.l.b16 %v1132
    %v1265 = vunpack.c.l.b16 %v1133
    %v1266 = vunpack.c.l.b16 %v1134
    %v1267 = vunpack.c.l.b16 %v1135
    %v1268 = vunpack.c.l.b16 %v1136
    %v1269 = vunpack.c.l.b16 %v1137
    %v1270 = vunpack.c.l.b16 %v1138
    %v1271 = vunpack.c.l.b16 %v1139
    %v1272 = vunpack.c.l.b16 %v1140
    %v1273 = vunpack.c.l.b16 %v1141
    %v1274 = vunpack.c.l.b16 %v1142
    %v1275 = vunpack.c.l.b16 %v1143
    %v1276 = vunpack.c.l.b16 %v1144
    %v1277 = vunpack.c.l.b16 %v1145
    %v1278 = vunpack.c.l.b16 %v1146
    %v1279 = vunpack.c.l.b16 %v1147
    %v1280 = vunpack.c.l.b16 %v1148
    %v1281 = vunpack.c.l.b16 %v1149
    %v1282 = vunpack.c.l.b16 %v1150
    %v1283 = vunpack.c.l.b16 %v1151
    %v1284 = vunpack.c.l.b16 %v1152
    %v1285 = vunpack.c.l.b16 %v1153
    %v1286 = vunpack.c.l.b16 %v1154
    %v1287 = vunpack.c.l.b16 %v1155
    %v1288 = vunpack.c.l.b16 %v1156
    %v1289 = vunpack.c.l.b16 %v1157
    %v1290 = vunpack.c.l.b16 %v1158
    %v1291 = vunpack.c.l.b16 %v1159
    %v1292 = vpack.c.b16 %v1229, %v1228
    %v1293 = vpack.c.b16 %v1231, %v1230
    %v1294 = vpack.c.b16 %v1233, %v1232
    %v1295 = vpack.c.b16 %v1235, %v1234
    %v1296 = vpack.c.b16 %v1237, %v1236
    %v1297 = vpack.c.b16 %v1239, %v1238
    %v1298 = vpack.c.b16 %v1241, %v1240
    %v1299 = vpack.c.b16 %v1243, %v1242
    %v1300 = vpack.c.b16 %v1245, %v1244
    %v1301 = vpack.c.b16 %v1247, %v1246
    %v1302 = vpack.c.b16 %v1249, %v1248
    %v1303 = vpack.c.b16 %v1251, %v1250
    %v1304 = vpack.c.b16 %v1253, %v1252
    %v1305 = vpack.c.b16 %v1255, %v1254
    %v1306 = vpack.c.b16 %v1257, %v1256
    %v1307 = vpack.c.b16 %v1259, %v1258
    %v1308 = vpack.c.b16 %v1261, %v1260
    %v1309 = vpack.c.b16 %v1263, %v1262
    %v1310 = vpack.c.b16 %v1265, %v1264
    %v1311 = vpack.c.b16 %v1267, %v1266
    %v1312 = vpack.c.b16 %v1269, %v1268
    %v1313 = vpack.c.b16 %v1271, %v1270
    %v1314 = vpack.c.b16 %v1273, %v1272
    %v1315 = vpack.c.b16 %v1275, %v1274
    %v1316 = vpack.c.b16 %v1277, %v1276
    %v1317 = vpack.c.b16 %v1279, %v1278
    %v1318 = vpack.c.b16 %v1281, %v1280
    %v1319 = vpack.c.b16 %v1283, %v1282
    %v1320 = vpack.c.b16 %v1285, %v1284
    %v1321 = vpack.c.b16 %v1287, %v1286
    %v1322 = vpack.c.b16 %v1289, %v1288
    %v1323 = vpack.c.b16 %v1291, %v1290
    %1356 = vmatpush.bf16.msra.mxu0 %v1299
    %1357 = vmatpush.bf16.msra.mxu0 %v1298
    %1358 = vmatpush.bf16.msra.mxu0 %v1297
    %1359 = vmatpush.bf16.msra.mxu0 %v1296
    %1360 = vmatpush.bf16.msra.mxu0 %v1295
    %1361 = vmatpush.bf16.msra.mxu0 %v1294
    %1362 = vmatpush.bf16.msra.mxu0 %v1293
    %1363 = vmatpush.bf16.msra.mxu0 %v1292
    %1364 = vmatmul.bf16.gmra.mxu0 %v1092
    %v1365 = vpop.f32.mrf.mxu0
    %v1366 = vadd.f32 %v1162, %v1365
    %v1367 = vpop.f32.mrf.mxu0
    %v1368 = vadd.f32 %v1162, %v1367
    %1369 = vdwg.mxu0
    %1370 = vmatpush.bf16.msra.mxu0 %v1307
    %1371 = vmatpush.bf16.msra.mxu0 %v1306
    %1372 = vmatpush.bf16.msra.mxu0 %v1305
    %1373 = vmatpush.bf16.msra.mxu0 %v1304
    %1374 = vmatpush.bf16.msra.mxu0 %v1303
    %1375 = vmatpush.bf16.msra.mxu0 %v1302
    %1376 = vmatpush.bf16.msra.mxu0 %v1301
    %1377 = vmatpush.bf16.msra.mxu0 %v1300
    %1378 = vmatmul.bf16.gmra.mxu0 %v1093
    %v1379 = vpop.f32.mrf.mxu0
    %v1380 = vadd.f32 %v1366, %v1379
    %v1381 = vpop.f32.mrf.mxu0
    %v1382 = vadd.f32 %v1368, %v1381
    %1383 = vdwg.mxu0
    %1384 = vmatpush.bf16.msra.mxu0 %v1315
    %1385 = vmatpush.bf16.msra.mxu0 %v1314
    %1386 = vmatpush.bf16.msra.mxu0 %v1313
    %1387 = vmatpush.bf16.msra.mxu0 %v1312
    %1388 = vmatpush.bf16.msra.mxu0 %v1311
    %1389 = vmatpush.bf16.msra.mxu0 %v1310
    %1390 = vmatpush.bf16.msra.mxu0 %v1309
    %1391 = vmatpush.bf16.msra.mxu0 %v1308
    %1392 = vmatmul.bf16.gmra.mxu0 %v1094
    %v1393 = vpop.f32.mrf.mxu0
    %v1394 = vadd.f32 %v1380, %v1393
    %v1395 = vpop.f32.mrf.mxu0
    %v1396 = vadd.f32 %v1382, %v1395
    %1397 = vdwg.mxu0
    %1398 = vmatpush.bf16.msra.mxu0 %v1323
    %1399 = vmatpush.bf16.msra.mxu0 %v1322
    %1400 = vmatpush.bf16.msra.mxu0 %v1321
    %1401 = vmatpush.bf16.msra.mxu0 %v1320
    %1402 = vmatpush.bf16.msra.mxu0 %v1319
    %1403 = vmatpush.bf16.msra.mxu0 %v1318
    %1404 = vmatpush.bf16.msra.mxu0 %v1317
    %1405 = vmatpush.bf16.msra.mxu0 %v1316
    %1406 = vmatmul.bf16.gmra.mxu0 %v1095
    %v1407 = vpop.f32.mrf.mxu0
    %v1408 = vadd.f32 %v1394, %v1407
    %v1409 = vpop.f32.mrf.mxu0
    %v1410 = vadd.f32 %v1396, %v1409
    %1411 = vdwg.mxu0
    %v1412 = vadd.f32 %v759, %v1408
    %v1413 = vadd.f32 %v760, %v1410
    %v1414 = vld [vmem:[%s13] sm:$0x1]
    %v1415 = vld [vmem:[%s14] sm:$0x1]
    %1416 = vadd.xlane.f32.xlu0 %v1412
    %v1417 = vpop.xlane.xlu0 %1416
    %1418 = vadd.xlane.f32.xlu0 %v1413
    %v1419 = vpop.xlane.xlu0 %1418
    %v1420 = vmul.f32 %v1417, %v708
    %v1421 = vmul.f32 %v1419, %v708
    %v1422 = vmul.f32 %v1412, %v1412
    %v1423 = vmul.f32 %v1413, %v1413
    %1424 = vadd.xlane.f32.xlu0 %v1422
    %v1425 = vpop.xlane.xlu0 %1424
    %1426 = vadd.xlane.f32.xlu0 %v1423
    %v1427 = vpop.xlane.xlu0 %1426
    %v1428 = vmul.f32 %v1425, %v708
    %v1429 = vmul.f32 %v1427, %v708
    %v1430 = vmul.f32 %v1420, %v1420
    %v1431 = vmul.f32 %v1421, %v1421
    %v1432 = vsub.f32 %v1428, %v1430
    %v1433 = vsub.f32 %v1429, %v1431
    %v1434 = vmax.f32 %v1432, 0.0
    %v1435 = vmax.f32 %v1433, 0.0
    %v1436 = vsub.f32 %v1412, %v1420
    %v1437 = vsub.f32 %v1413, %v1421
    %v1438 = vadd.f32 %v1434, 1e-12
    %v1439 = vadd.f32 %v1435, 1e-12
    %v1440 = vrsqrt.pop %v1438
    %v1441 = vmul.f32 %v1440, %v1438
    %v1442 = vmul.f32 %v1441, %v1440
    %v1443 = vmul.f32 0.5, %v1442
    %v1444 = vsub.f32 1.5, %v1443
    %v1445 = vmul.f32 %v1440, %v1444
    %vm1446 = vweird.f32 %v1438
    %vm1447 = vweird.f32 %v1440
    %vm1448 = vmor %vm1446, %vm1447
    %v1449 = vsel %vm1448, %v1440, %v1445
    %v1450 = vrsqrt.pop %v1439
    %v1451 = vmul.f32 %v1450, %v1439
    %v1452 = vmul.f32 %v1451, %v1450
    %v1453 = vmul.f32 0.5, %v1452
    %v1454 = vsub.f32 1.5, %v1453
    %v1455 = vmul.f32 %v1450, %v1454
    %vm1456 = vweird.f32 %v1439
    %vm1457 = vweird.f32 %v1450
    %vm1458 = vmor %vm1456, %vm1457
    %v1459 = vsel %vm1458, %v1450, %v1455
    %v1460 = vmul.f32 %v1436, %v1449
    %v1461 = vmul.f32 %v1437, %v1459
    %v1463 = vperm.slane %v1414, 0
    %v1465 = vmul.f32 %v1460, %v1463
    %v1466 = vmul.f32 %v1461, %v1463
    %v1468 = vperm.slane %v1415, 0
    %v1470 = vadd.f32 %v1465, %v1468
    %v1471 = vadd.f32 %v1466, %v1468
    %v1472 = vld [vmem:[%s2] sm:$0xff]
    %v1473 = vld [vmem:[%s2 + $0x8] sm:$0xff]
    %1475 = vset.pattern.permute.xlu0 0
    %1476 = vperm.xlu0 %1475, %v1472
    %v1477 = vpop.permute.xlu0 %1476
    %1480 = vset.pattern.permute.xlu0 0
    %1481 = vperm.xlu0 %1480, %v1473
    %v1482 = vpop.permute.xlu0 %1481
    %v1484 = vmul.f32 %v1470, %v1477
    %v1485 = vmul.f32 %v1471, %v1482
    %v1486 = vrot.slane %v1484, 4
    %v1487 = vadd.f32 %v1484, %v1486
    %v1488 = vrot.slane %v1487, 2
    %v1489 = vadd.f32 %v1487, %v1488
    %v1490 = vrot.slane %v1489, 1
    %v1491 = vadd.f32 %v1489, %v1490
    %v1492 = vrot.slane %v1485, 4
    %v1493 = vadd.f32 %v1485, %v1492
    %v1494 = vrot.slane %v1493, 2
    %v1495 = vadd.f32 %v1493, %v1494
    %v1496 = vrot.slane %v1495, 1
    %v1497 = vadd.f32 %v1495, %v1496
    %vm1498 = vcmask 7168
    %v1499 = vsel %vm1498, %v1472, 0.0
    %v1500 = vrot.slane %v1499, 4
    %v1501 = vadd.f32 %v1499, %v1500
    %v1502 = vrot.slane %v1501, 2
    %v1503 = vadd.f32 %v1501, %v1502
    %v1504 = vrot.slane %v1503, 1
    %v1505 = vadd.f32 %v1503, %v1504
    %v1506 = vsel %vm1498, %v1473, 0.0
    %v1507 = vrot.slane %v1506, 4
    %v1508 = vadd.f32 %v1506, %v1507
    %v1509 = vrot.slane %v1508, 2
    %v1510 = vadd.f32 %v1508, %v1509
    %v1511 = vrot.slane %v1510, 1
    %v1512 = vadd.f32 %v1510, %v1511
    %v1513 = vmax.f32 %v1505, 1e-09
    %v1514 = vmax.f32 %v1512, 1e-09
    %1516 = vset.pattern.permute.xlu0 0
    %1517 = vperm.xlu0 %1516, %v1513
    %v1518 = vpop.permute.xlu0 %1517
    %1521 = vset.pattern.permute.xlu0 0
    %1522 = vperm.xlu0 %1521, %v1514
    %v1523 = vpop.permute.xlu0 %1522
    %v1525 = vrcp.pop %v1518
    %v1526 = vmul.f32 %v1518, %v1525
    %v1527 = vsub.f32 1.0, %v1526
    %v1528 = vmul.f32 %v1525, %v1527
    %v1529 = vadd.f32 %v1525, %v1528
    %vm1530 = vweird.f32 %v1518
    %vm1531 = vweird.f32 %v1525
    %vm1532 = vmor %vm1530, %vm1531
    %v1533 = vsel %vm1532, %v1525, %v1529
    %v1534 = vand.u32 2147483647, %v1518
    %vm1535 = vcmp.eq.f32.partialorder %v1534, 8.507059e+37
    %v1536 = vand.u32 %v1518, 2147483648
    %v1537 = vor.u32 1.1754944e-38, %v1536
    %v1538 = vsel %vm1535, %v1537, %v1533
    %v1539 = vmul.f32 %v1491, %v1538
    %v1540 = vrcp.pop %v1523
    %v1541 = vmul.f32 %v1523, %v1540
    %v1542 = vsub.f32 1.0, %v1541
    %v1543 = vmul.f32 %v1540, %v1542
    %v1544 = vadd.f32 %v1540, %v1543
    %vm1545 = vweird.f32 %v1523
    %vm1546 = vweird.f32 %v1540
    %vm1547 = vmor %vm1545, %vm1546
    %v1548 = vsel %vm1547, %v1540, %v1544
    %v1549 = vand.u32 2147483647, %v1523
    %vm1550 = vcmp.eq.f32.partialorder %v1549, 8.507059e+37
    %v1551 = vand.u32 %v1523, 2147483648
    %v1552 = vor.u32 1.1754944e-38, %v1551
    %v1553 = vsel %vm1550, %v1552, %v1548
    %v1554 = vmul.f32 %v1497, %v1553
    %vm1557 = vcmask 1041409
    %v1558 = vsel %vm1557, %v1554, %v1539
    %1560 = vst [vmem:[#allocation13] sm:$0x3] %v1558
    // Predicated region
    $region86: #{tpu_custom_call.1} parent=1 // pred_check
      _
    $region87: #{tpu_custom_call.1} parent=1 // pred_check_branch
      %1562 = sbr.rel (0) target = $region89
    $region88: #{tpu_custom_call.1} parent=1 // pred_region
      %1564 = vsyncadd [#allocation4], 0
      %s1566 = sshll.u32 [#allocation13], 4
      %s1567 = int_to_ptr.vmem [resolvable:$true] %s1566
      %s1568 = sshll.u32 %s15, 4
      %s1569 = int_to_ptr.hbm [resolvable:$true] %s1568
      %1571 = dma.vmem_to_hbm [thread:$0]  %s1567, 32, %s1569, [#allocation4]
    $region89: #{tpu_custom_call.1} parent=1 // pred_fallthru
      _
    // Predicated region
    $region90: #{tpu_custom_call.1} parent=1 // pred_check
      _
    $region91: #{tpu_custom_call.1} parent=1 // pred_check_branch
      %1573 = sbr.rel (0) target = $region93
    $region92: #{tpu_custom_call.1} parent=1 // pred_region
      %1575 = dma.done [#allocation4], 32
    $region93: #{tpu_custom_call.1} parent=1 // pred_fallthru
      _
    %1576 = vsyncpa [#allocation3], 1
    %1577 = vsyncpa [#allocation6], 1
    %1578 = vsyncpa [#allocation9], 1
    %1579 = vsyncpa [#allocation12], 1
    %1580 = vsyncpa [#allocation4], 1

</llo_original>
